<compile_context>
chip_gen: v5e
topology: v5e:2x2
jax: 0.10.0
libtpu: 0.0.40
codegen_flags: <defaults>
</compile_context>

<pallas_src>
import numpy as np
import jax
import jax.numpy as jnp
from jax.experimental import pallas as pl
from jax.experimental.pallas import tpu as pltpu

K = 5            # conv kernel size
H_IN = W_IN = 32
OH1 = OW1 = 28   # conv1 output spatial
PH1 = PW1 = 14   # pool1 output spatial
OH2 = OW2 = 10   # conv2 output spatial
PH2 = PW2 = 5    # pool2 output spatial
C1, C2 = 6, 16
L1 = OW1 * C1            # 168 : conv1 lanes, index j*6+c
LQ1 = L1 - C1            # 162 : pool1 (uncompacted-W) lanes
L2 = OW2 * C2            # 160 : conv2 lanes, index j*16+oc
LQ2 = L2 - C2            # 144 : pool2 (uncompacted-W) lanes
N1, N2, NOUT = 120, 84, 10


# ---------------------------------------------------------------------------
# Fused Pallas kernel: one sample per grid step
# ---------------------------------------------------------------------------

def _lenet_kernel(x_ref, w1m_ref, b1_ref, w2m_ref, b2_ref,
                  fc1m_ref, fc1b_ref, fc2w_ref, fc2b_ref, fc3w_ref, fc3b_ref,
                  out_ref, q1_ref):
    f32 = jnp.float32
    x = x_ref[0]                                          # (32, 32)

    # ---- conv1: 5 banded MXU matmuls (one per row-tap ki) + bias + ReLU ----
    r1 = jnp.zeros((OH1, L1), f32)
    for ki in range(K):
        r1 += jnp.dot(x[ki:ki + OH1, :], w1m_ref[ki], preferred_element_type=f32)
    s1 = jnp.maximum(r1 + b1_ref[...], 0.0)               # (28, 168), lane = j*6+c

    # ---- pool1 (2x2): W pair-max via shifted lane slice (uncompacted),
    #      H pair-max as 14 full-row maxes into a small VMEM scratch ----
    s1w = jnp.maximum(s1[:, 0:LQ1], s1[:, C1:L1])         # (28, 162), valid at lane (2w)*6+c
    for h in range(PH1):
        q1_ref[pl.ds(h, 1), :] = jnp.maximum(s1w[2 * h:2 * h + 1, :],
                                             s1w[2 * h + 1:2 * h + 2, :])

    # ---- conv2: 5 banded MXU matmuls; pool1's W compaction lives in w2m's zero pattern ----
    r2 = jnp.zeros((OH2, L2), f32)
    for ki in range(K):
        r2 += jnp.dot(q1_ref[ki:ki + OH2, :], w2m_ref[ki], preferred_element_type=f32)
    s2 = jnp.maximum(r2 + b2_ref[...], 0.0)               # (10, 160), lane = j*16+oc

    # ---- pool2 (2x2) + fc1: W pair-max via shifted slice, H pair-max per output row;
    #      pooled-W compaction + PyTorch NCHW flatten order are folded into fc1m ----
    s2w = jnp.maximum(s2[:, 0:LQ2], s2[:, C2:L2])         # (10, 144), valid at lane (2w)*16+oc
    h1 = jnp.zeros((1, N1), f32)
    for h in range(PH2):
        q2 = jnp.maximum(s2w[2 * h:2 * h + 1, :], s2w[2 * h + 1:2 * h + 2, :])  # (1, 144)
        h1 += jnp.dot(q2, fc1m_ref[h], preferred_element_type=f32)
    h1 = jnp.maximum(h1 + fc1b_ref[...], 0.0)             # (1, 120)

    # ---- fc2 / fc3 ----
    h2 = jnp.maximum(jnp.dot(h1, fc2w_ref[...], preferred_element_type=f32)
                     + fc2b_ref[...], 0.0)                # (1, 84)
    out = jnp.dot(h2, fc3w_ref[...], preferred_element_type=f32) + fc3b_ref[...]
    out_ref[0] = out.astype(out_ref.dtype)                # (1, 10)


# ---------------------------------------------------------------------------
# Wrapper
# ---------------------------------------------------------------------------

def net_forward(x_nchw, pp):
    """x_nchw: (B, 1, 32, 32) float32; pp: packed params from pack_params()."""
    B = x_nchw.shape[0]
    x = x_nchw.reshape(B, H_IN, W_IN)                     # squeeze the singleton channel

    full = lambda arr: pl.BlockSpec(arr.shape, lambda b: (0,) * arr.ndim)
    out = pl.pallas_call(
        _lenet_kernel,
        out_shape=jax.ShapeDtypeStruct((B, 1, NOUT), jnp.float32),
        grid=(B,),
        in_specs=[
            pl.BlockSpec((1, H_IN, W_IN), lambda b: (b, 0, 0)),
            full(pp["w1m"]), full(pp["b1t"]),
            full(pp["w2m"]), full(pp["b2t"]),
            full(pp["fc1m"]), full(pp["fc1b"]),
            full(pp["fc2w"]), full(pp["fc2b"]),
            full(pp["fc3w"]), full(pp["fc3b"]),
        ],
        out_specs=pl.BlockSpec((1, 1, NOUT), lambda b: (b, 0, 0)),
        scratch_shapes=[pltpu.VMEM((PH1, LQ1), jnp.float32)],   # pooled conv1 rows
        compiler_params=pltpu.CompilerParams(dimension_semantics=("parallel",)),
    )(x, pp["w1m"], pp["b1t"], pp["w2m"], pp["b2t"],
      pp["fc1m"], pp["fc1b"], pp["fc2w"], pp["fc2b"], pp["fc3w"], pp["fc3b"])
    return out.reshape(B, NOUT)


# ---------------------------------------------------------------------------
# One-time host-side weight repacking into banded / zero-padded MXU matrices
# ---------------------------------------------------------------------------

def pack_params(p):
    w1 = np.asarray(p["conv1_w"], np.float32)    # (6, 1, 5, 5)
    w2 = np.asarray(p["conv2_w"], np.float32)    # (16, 6, 5, 5)
    fc1 = np.asarray(p["fc1_w"], np.float32)     # (120, 400)

    # conv1 band: w1m[ki, j+kj, j*6+c] = w1[c, 0, ki, kj]
    w1m = np.zeros((K, W_IN, L1), np.float32)
    for ki in range(K):
        for kj in range(K):
            for j in range(OW1):
                w1m[ki, j + kj, j * C1:(j + 1) * C1] = w1[:, 0, ki, kj]

    # conv2 band over the H-pooled, W-pair-maxed (uncompacted) rows:
    # input lane m = 2*(j+kj)*6 + c holds pooled p1[., j+kj, c]
    w2m = np.zeros((K, LQ1, L2), np.float32)
    for ki in range(K):
        for kj in range(K):
            for j in range(OW2):
                m0 = 2 * (j + kj) * C1
                w2m[ki, m0:m0 + C1, j * C2:(j + 1) * C2] = w2[:, :, ki, kj].T  # (c, oc)

    # fc1 with pool2's W compaction + PyTorch NCHW flatten (idx = oc*25 + h*5 + w) folded in:
    # input lane 2*w*16 + oc of row h holds pooled2[h, w, oc]
    fc1m = np.zeros((PH2, LQ2, N1), np.float32)
    for h in range(PH2):
        for w in range(PW2):
            for oc in range(C2):
                fc1m[h, 2 * w * C2 + oc, :] = fc1[:, oc * PH2 * PW2 + h * PW2 + w]

    return {
        "w1m": jnp.asarray(w1m),
        "b1t": jnp.asarray(np.tile(np.asarray(p["conv1_b"], np.float32), OW1).reshape(1, L1)),
        "w2m": jnp.asarray(w2m),
        "b2t": jnp.asarray(np.tile(np.asarray(p["conv2_b"], np.float32), OW2).reshape(1, L2)),
        "fc1m": jnp.asarray(fc1m),
        "fc1b": jnp.asarray(np.asarray(p["fc1_b"], np.float32).reshape(1, -1)),
        "fc2w": jnp.asarray(np.asarray(p["fc2_w"], np.float32).T),
        "fc2b": jnp.asarray(np.asarray(p["fc2_b"], np.float32).reshape(1, -1)),
        "fc3w": jnp.asarray(np.asarray(p["fc3_w"], np.float32).T),
        "fc3b": jnp.asarray(np.asarray(p["fc3_b"], np.float32).reshape(1, -1)),
    }


# ---------------------------------------------------------------------------
# Params + pure-XLA reference (for correctness check)
# ---------------------------------------------------------------------------

def init_params(key):
    def uniform(k, shape, fan_in):
        bound = 1.0 / jnp.sqrt(jnp.float32(fan_in))
        return jax.random.uniform(k, shape, jnp.float32, -bound, bound)

    ks = jax.random.split(key, 10)
    return {
        "conv1_w": uniform(ks[0], (6, 1, 5, 5), 1 * 5 * 5),
        "conv1_b": uniform(ks[1], (6,), 1 * 5 * 5),
        "conv2_w": uniform(ks[2], (16, 6, 5, 5), 6 * 5 * 5),
        "conv2_b": uniform(ks[3], (16,), 6 * 5 * 5),
        "fc1_w": uniform(ks[4], (120, 400), 400),
        "fc1_b": uniform(ks[5], (120,), 400),
        "fc2_w": uniform(ks[6], (84, 120), 120),
        "fc2_b": uniform(ks[7], (84,), 120),
        "fc3_w": uniform(ks[8], (10, 84), 84),
        "fc3_b": uniform(ks[9], (10,), 84),
    }


def reference_forward(x, p):
    """Pure-XLA reference with the exact semantics of the PyTorch Net.forward."""
    dn = ("NCHW", "OIHW", "NCHW")
    hp = jax.lax.Precision.HIGHEST
    y = jax.lax.conv_general_dilated(x, p["conv1_w"], (1, 1), "VALID",
                                     dimension_numbers=dn, precision=hp)
    y = jnp.maximum(y + p["conv1_b"].reshape(1, -1, 1, 1), 0.0)
    y = jax.lax.reduce_window(y, -jnp.inf, jax.lax.max, (1, 1, 2, 2), (1, 1, 2, 2), "VALID")
    y = jax.lax.conv_general_dilated(y, p["conv2_w"], (1, 1), "VALID",
                                     dimension_numbers=dn, precision=hp)
    y = jnp.maximum(y + p["conv2_b"].reshape(1, -1, 1, 1), 0.0)
    y = jax.lax.reduce_window(y, -jnp.inf, jax.lax.max, (1, 1, 2, 2), (1, 1, 2, 2), "VALID")
    y = y.reshape(y.shape[0], -1)                         # PyTorch NCHW flatten
    y = jnp.maximum(jnp.dot(y, p["fc1_w"].T, precision=hp) + p["fc1_b"], 0.0)
    y = jnp.maximum(jnp.dot(y, p["fc2_w"].T, precision=hp) + p["fc2_b"], 0.0)
    return jnp.dot(y, p["fc3_w"].T, precision=hp) + p["fc3_b"]


if __name__ == "__main__":
    # TODO(synk): the print(x.size()) debug statements in the PyTorch forward are omitted.
    key = jax.random.PRNGKey(0)
    k_params, k_x = jax.random.split(key)
    params = init_params(k_params)
    x = jax.random.normal(k_x, (2, 1, 32, 32), jnp.float32)   # LeNet expects 32x32 x 1ch

    packed = pack_params(params)                 # one-time host-side weight repack
    fwd = jax.jit(net_forward)
    out = jax.block_until_ready(fwd(x, packed))
    assert out.shape == (2, 10) and out.dtype == jnp.float32

    ref = jax.block_until_ready(reference_forward(x, params))
    assert bool(jnp.allclose(out, ref, rtol=1e-4, atol=1e-4)), (
        f"mismatch vs XLA reference: max abs err = {float(jnp.max(jnp.abs(out - ref)))}")
    print("KERNEL_OK")
</pallas_src>

<mosaic_0001>
module attributes {stable_mosaic.version = 11 : i64} {
  func.func @_lenet_kernel(%arg0: i32, %arg1: memref<1x32x32xf32, #tpu.memory_space<vmem>>, %arg2: memref<5x32x168xf32, #tpu.memory_space<vmem>>, %arg3: memref<1x168xf32, #tpu.memory_space<vmem>>, %arg4: memref<5x162x160xf32, #tpu.memory_space<vmem>>, %arg5: memref<1x160xf32, #tpu.memory_space<vmem>>, %arg6: memref<5x144x120xf32, #tpu.memory_space<vmem>>, %arg7: memref<1x120xf32, #tpu.memory_space<vmem>>, %arg8: memref<120x84xf32, #tpu.memory_space<vmem>>, %arg9: memref<1x84xf32, #tpu.memory_space<vmem>>, %arg10: memref<84x10xf32, #tpu.memory_space<vmem>>, %arg11: memref<1x10xf32, #tpu.memory_space<vmem>>, %arg12: memref<1x1x10xf32, #tpu.memory_space<vmem>>, %arg13: memref<14x162xf32, #tpu.memory_space<vmem>>) attributes {dimension_semantics = [#tpu.dimension_semantics<parallel>], iteration_bounds = array<i64: 2>, scalar_prefetch = 0 : i64, scratch_operands = 1 : i64, tpu.core_type = #tpu.core_type<tc>, window_params = [{transform_indices = @transform_0, window_bounds = array<i64: 1, 32, 32>}, {pipeline_mode = #tpu.pipeline_mode<synchronous>, transform_indices = @transform_1, window_bounds = array<i64: 5, 32, 168>}, {pipeline_mode = #tpu.pipeline_mode<synchronous>, transform_indices = @transform_2, window_bounds = array<i64: 1, 168>}, {pipeline_mode = #tpu.pipeline_mode<synchronous>, transform_indices = @transform_3, window_bounds = array<i64: 5, 162, 160>}, {pipeline_mode = #tpu.pipeline_mode<synchronous>, transform_indices = @transform_4, window_bounds = array<i64: 1, 160>}, {pipeline_mode = #tpu.pipeline_mode<synchronous>, transform_indices = @transform_5, window_bounds = array<i64: 5, 144, 120>}, {pipeline_mode = #tpu.pipeline_mode<synchronous>, transform_indices = @transform_6, window_bounds = array<i64: 1, 120>}, {pipeline_mode = #tpu.pipeline_mode<synchronous>, transform_indices = @transform_7, window_bounds = array<i64: 120, 84>}, {pipeline_mode = #tpu.pipeline_mode<synchronous>, transform_indices = @transform_8, window_bounds = array<i64: 1, 84>}, {pipeline_mode = #tpu.pipeline_mode<synchronous>, transform_indices = @transform_9, window_bounds = array<i64: 84, 10>}, {pipeline_mode = #tpu.pipeline_mode<synchronous>, transform_indices = @transform_10, window_bounds = array<i64: 1, 10>}, {transform_indices = @transform_11, window_bounds = array<i64: 1, 1, 10>}]} {
    %c0 = arith.constant 0 : index
    %c0_0 = arith.constant 0 : index
    %c0_1 = arith.constant 0 : index
    %0 = vector.load %arg1[%c0, %c0_0, %c0_1] : memref<1x32x32xf32, #tpu.memory_space<vmem>>, vector<1x32x32xf32>
    %1 = vector.shape_cast %0 : vector<1x32x32xf32> to vector<32x32xf32>
    %cst = arith.constant 0.000000e+00 : f32
    %2 = vector.broadcast %cst : f32 to vector<28x168xf32>
    %3 = vector.extract_strided_slice %1 {offsets = [0, 0], sizes = [28, 32], strides = [1, 1]} : vector<32x32xf32> to vector<28x32xf32>
    %c0_2 = arith.constant 0 : index
    %c0_3 = arith.constant 0 : index
    %c0_4 = arith.constant 0 : index
    %4 = vector.load %arg2[%c0_2, %c0_3, %c0_4] : memref<5x32x168xf32, #tpu.memory_space<vmem>>, vector<1x32x168xf32>
    %5 = vector.shape_cast %4 : vector<1x32x168xf32> to vector<32x168xf32>
    %cst_5 = arith.constant dense<0.000000e+00> : vector<28x168xf32>
    %6 = tpu.matmul %3, %5, %cst_5 {dimension_numbers = #tpu.dot_dimension_numbers<[1], [0], [0], [1], [0, 0, 1, 1], [], []>} : vector<28x32xf32>, vector<32x168xf32>, vector<28x168xf32> -> vector<28x168xf32>
    %7 = arith.addf %2, %6 : vector<28x168xf32>
    %8 = vector.extract_strided_slice %1 {offsets = [1, 0], sizes = [28, 32], strides = [1, 1]} : vector<32x32xf32> to vector<28x32xf32>
    %c1 = arith.constant 1 : index
    %c0_6 = arith.constant 0 : index
    %c0_7 = arith.constant 0 : index
    %9 = vector.load %arg2[%c1, %c0_6, %c0_7] : memref<5x32x168xf32, #tpu.memory_space<vmem>>, vector<1x32x168xf32>
    %10 = vector.shape_cast %9 : vector<1x32x168xf32> to vector<32x168xf32>
    %cst_8 = arith.constant dense<0.000000e+00> : vector<28x168xf32>
    %11 = tpu.matmul %8, %10, %cst_8 {dimension_numbers = #tpu.dot_dimension_numbers<[1], [0], [0], [1], [0, 0, 1, 1], [], []>} : vector<28x32xf32>, vector<32x168xf32>, vector<28x168xf32> -> vector<28x168xf32>
    %12 = arith.addf %7, %11 : vector<28x168xf32>
    %13 = vector.extract_strided_slice %1 {offsets = [2, 0], sizes = [28, 32], strides = [1, 1]} : vector<32x32xf32> to vector<28x32xf32>
    %c2 = arith.constant 2 : index
    %c0_9 = arith.constant 0 : index
    %c0_10 = arith.constant 0 : index
    %14 = vector.load %arg2[%c2, %c0_9, %c0_10] : memref<5x32x168xf32, #tpu.memory_space<vmem>>, vector<1x32x168xf32>
    %15 = vector.shape_cast %14 : vector<1x32x168xf32> to vector<32x168xf32>
    %cst_11 = arith.constant dense<0.000000e+00> : vector<28x168xf32>
    %16 = tpu.matmul %13, %15, %cst_11 {dimension_numbers = #tpu.dot_dimension_numbers<[1], [0], [0], [1], [0, 0, 1, 1], [], []>} : vector<28x32xf32>, vector<32x168xf32>, vector<28x168xf32> -> vector<28x168xf32>
    %17 = arith.addf %12, %16 : vector<28x168xf32>
    %18 = vector.extract_strided_slice %1 {offsets = [3, 0], sizes = [28, 32], strides = [1, 1]} : vector<32x32xf32> to vector<28x32xf32>
    %c3 = arith.constant 3 : index
    %c0_12 = arith.constant 0 : index
    %c0_13 = arith.constant 0 : index
    %19 = vector.load %arg2[%c3, %c0_12, %c0_13] : memref<5x32x168xf32, #tpu.memory_space<vmem>>, vector<1x32x168xf32>
    %20 = vector.shape_cast %19 : vector<1x32x168xf32> to vector<32x168xf32>
    %cst_14 = arith.constant dense<0.000000e+00> : vector<28x168xf32>
    %21 = tpu.matmul %18, %20, %cst_14 {dimension_numbers = #tpu.dot_dimension_numbers<[1], [0], [0], [1], [0, 0, 1, 1], [], []>} : vector<28x32xf32>, vector<32x168xf32>, vector<28x168xf32> -> vector<28x168xf32>
    %22 = arith.addf %17, %21 : vector<28x168xf32>
    %23 = vector.extract_strided_slice %1 {offsets = [4, 0], sizes = [28, 32], strides = [1, 1]} : vector<32x32xf32> to vector<28x32xf32>
    %c4 = arith.constant 4 : index
    %c0_15 = arith.constant 0 : index
    %c0_16 = arith.constant 0 : index
    %24 = vector.load %arg2[%c4, %c0_15, %c0_16] : memref<5x32x168xf32, #tpu.memory_space<vmem>>, vector<1x32x168xf32>
    %25 = vector.shape_cast %24 : vector<1x32x168xf32> to vector<32x168xf32>
    %cst_17 = arith.constant dense<0.000000e+00> : vector<28x168xf32>
    %26 = tpu.matmul %23, %25, %cst_17 {dimension_numbers = #tpu.dot_dimension_numbers<[1], [0], [0], [1], [0, 0, 1, 1], [], []>} : vector<28x32xf32>, vector<32x168xf32>, vector<28x168xf32> -> vector<28x168xf32>
    %27 = arith.addf %22, %26 : vector<28x168xf32>
    %c0_18 = arith.constant 0 : index
    %c0_19 = arith.constant 0 : index
    %28 = vector.load %arg3[%c0_18, %c0_19] : memref<1x168xf32, #tpu.memory_space<vmem>>, vector<1x168xf32>
    %29 = vector.broadcast %28 : vector<1x168xf32> to vector<28x168xf32>
    %30 = arith.addf %27, %29 : vector<28x168xf32>
    %cst_20 = arith.constant 0.000000e+00 : f32
    %31 = vector.broadcast %cst_20 : f32 to vector<28x168xf32>
    %32 = arith.maximumf %30, %31 : vector<28x168xf32>
    %33 = vector.extract_strided_slice %32 {offsets = [0, 0], sizes = [28, 162], strides = [1, 1]} : vector<28x168xf32> to vector<28x162xf32>
    %34 = vector.extract_strided_slice %32 {offsets = [0, 6], sizes = [28, 162], strides = [1, 1]} : vector<28x168xf32> to vector<28x162xf32>
    %35 = arith.maximumf %33, %34 : vector<28x162xf32>
    %36 = vector.extract_strided_slice %35 {offsets = [0, 0], sizes = [1, 162], strides = [1, 1]} : vector<28x162xf32> to vector<1x162xf32>
    %37 = vector.extract_strided_slice %35 {offsets = [1, 0], sizes = [1, 162], strides = [1, 1]} : vector<28x162xf32> to vector<1x162xf32>
    %38 = arith.maximumf %36, %37 : vector<1x162xf32>
    %c0_21 = arith.constant 0 : index
    %c0_22 = arith.constant 0 : index
    %39 = vector.load %arg13[%c0_21, %c0_22] : memref<14x162xf32, #tpu.memory_space<vmem>>, vector<1x162xf32>
    tpu.vector_store %arg13[%c0_21, %c0_22], %38 {strides = array<i32>} : memref<14x162xf32, #tpu.memory_space<vmem>>, vector<1x162xf32>,
    %40 = vector.extract_strided_slice %35 {offsets = [2, 0], sizes = [1, 162], strides = [1, 1]} : vector<28x162xf32> to vector<1x162xf32>
    %41 = vector.extract_strided_slice %35 {offsets = [3, 0], sizes = [1, 162], strides = [1, 1]} : vector<28x162xf32> to vector<1x162xf32>
    %42 = arith.maximumf %40, %41 : vector<1x162xf32>
    %c1_23 = arith.constant 1 : index
    %c0_24 = arith.constant 0 : index
    %43 = vector.load %arg13[%c1_23, %c0_24] : memref<14x162xf32, #tpu.memory_space<vmem>>, vector<1x162xf32>
    tpu.vector_store %arg13[%c1_23, %c0_24], %42 {strides = array<i32>} : memref<14x162xf32, #tpu.memory_space<vmem>>, vector<1x162xf32>,
    %44 = vector.extract_strided_slice %35 {offsets = [4, 0], sizes = [1, 162], strides = [1, 1]} : vector<28x162xf32> to vector<1x162xf32>
    %45 = vector.extract_strided_slice %35 {offsets = [5, 0], sizes = [1, 162], strides = [1, 1]} : vector<28x162xf32> to vector<1x162xf32>
    %46 = arith.maximumf %44, %45 : vector<1x162xf32>
    %c2_25 = arith.constant 2 : index
    %c0_26 = arith.constant 0 : index
    %47 = vector.load %arg13[%c2_25, %c0_26] : memref<14x162xf32, #tpu.memory_space<vmem>>, vector<1x162xf32>
    tpu.vector_store %arg13[%c2_25, %c0_26], %46 {strides = array<i32>} : memref<14x162xf32, #tpu.memory_space<vmem>>, vector<1x162xf32>,
    %48 = vector.extract_strided_slice %35 {offsets = [6, 0], sizes = [1, 162], strides = [1, 1]} : vector<28x162xf32> to vector<1x162xf32>
    %49 = vector.extract_strided_slice %35 {offsets = [7, 0], sizes = [1, 162], strides = [1, 1]} : vector<28x162xf32> to vector<1x162xf32>
    %50 = arith.maximumf %48, %49 : vector<1x162xf32>
    %c3_27 = arith.constant 3 : index
    %c0_28 = arith.constant 0 : index
    %51 = vector.load %arg13[%c3_27, %c0_28] : memref<14x162xf32, #tpu.memory_space<vmem>>, vector<1x162xf32>
    tpu.vector_store %arg13[%c3_27, %c0_28], %50 {strides = array<i32>} : memref<14x162xf32, #tpu.memory_space<vmem>>, vector<1x162xf32>,
    %52 = vector.extract_strided_slice %35 {offsets = [8, 0], sizes = [1, 162], strides = [1, 1]} : vector<28x162xf32> to vector<1x162xf32>
    %53 = vector.extract_strided_slice %35 {offsets = [9, 0], sizes = [1, 162], strides = [1, 1]} : vector<28x162xf32> to vector<1x162xf32>
    %54 = arith.maximumf %52, %53 : vector<1x162xf32>
    %c4_29 = arith.constant 4 : index
    %c0_30 = arith.constant 0 : index
    %55 = vector.load %arg13[%c4_29, %c0_30] : memref<14x162xf32, #tpu.memory_space<vmem>>, vector<1x162xf32>
    tpu.vector_store %arg13[%c4_29, %c0_30], %54 {strides = array<i32>} : memref<14x162xf32, #tpu.memory_space<vmem>>, vector<1x162xf32>,
    %56 = vector.extract_strided_slice %35 {offsets = [10, 0], sizes = [1, 162], strides = [1, 1]} : vector<28x162xf32> to vector<1x162xf32>
    %57 = vector.extract_strided_slice %35 {offsets = [11, 0], sizes = [1, 162], strides = [1, 1]} : vector<28x162xf32> to vector<1x162xf32>
    %58 = arith.maximumf %56, %57 : vector<1x162xf32>
    %c5 = arith.constant 5 : index
    %c0_31 = arith.constant 0 : index
    %59 = vector.load %arg13[%c5, %c0_31] : memref<14x162xf32, #tpu.memory_space<vmem>>, vector<1x162xf32>
    tpu.vector_store %arg13[%c5, %c0_31], %58 {strides = array<i32>} : memref<14x162xf32, #tpu.memory_space<vmem>>, vector<1x162xf32>,
    %60 = vector.extract_strided_slice %35 {offsets = [12, 0], sizes = [1, 162], strides = [1, 1]} : vector<28x162xf32> to vector<1x162xf32>
    %61 = vector.extract_strided_slice %35 {offsets = [13, 0], sizes = [1, 162], strides = [1, 1]} : vector<28x162xf32> to vector<1x162xf32>
    %62 = arith.maximumf %60, %61 : vector<1x162xf32>
    %c6 = arith.constant 6 : index
    %c0_32 = arith.constant 0 : index
    %63 = vector.load %arg13[%c6, %c0_32] : memref<14x162xf32, #tpu.memory_space<vmem>>, vector<1x162xf32>
    tpu.vector_store %arg13[%c6, %c0_32], %62 {strides = array<i32>} : memref<14x162xf32, #tpu.memory_space<vmem>>, vector<1x162xf32>,
    %64 = vector.extract_strided_slice %35 {offsets = [14, 0], sizes = [1, 162], strides = [1, 1]} : vector<28x162xf32> to vector<1x162xf32>
    %65 = vector.extract_strided_slice %35 {offsets = [15, 0], sizes = [1, 162], strides = [1, 1]} : vector<28x162xf32> to vector<1x162xf32>
    %66 = arith.maximumf %64, %65 : vector<1x162xf32>
    %c7 = arith.constant 7 : index
    %c0_33 = arith.constant 0 : index
    %67 = vector.load %arg13[%c7, %c0_33] : memref<14x162xf32, #tpu.memory_space<vmem>>, vector<1x162xf32>
    tpu.vector_store %arg13[%c7, %c0_33], %66 {strides = array<i32>} : memref<14x162xf32, #tpu.memory_space<vmem>>, vector<1x162xf32>,
    %68 = vector.extract_strided_slice %35 {offsets = [16, 0], sizes = [1, 162], strides = [1, 1]} : vector<28x162xf32> to vector<1x162xf32>
    %69 = vector.extract_strided_slice %35 {offsets = [17, 0], sizes = [1, 162], strides = [1, 1]} : vector<28x162xf32> to vector<1x162xf32>
    %70 = arith.maximumf %68, %69 : vector<1x162xf32>
    %c8 = arith.constant 8 : index
    %c0_34 = arith.constant 0 : index
    %71 = vector.load %arg13[%c8, %c0_34] : memref<14x162xf32, #tpu.memory_space<vmem>>, vector<1x162xf32>
    tpu.vector_store %arg13[%c8, %c0_34], %70 {strides = array<i32>} : memref<14x162xf32, #tpu.memory_space<vmem>>, vector<1x162xf32>,
    %72 = vector.extract_strided_slice %35 {offsets = [18, 0], sizes = [1, 162], strides = [1, 1]} : vector<28x162xf32> to vector<1x162xf32>
    %73 = vector.extract_strided_slice %35 {offsets = [19, 0], sizes = [1, 162], strides = [1, 1]} : vector<28x162xf32> to vector<1x162xf32>
    %74 = arith.maximumf %72, %73 : vector<1x162xf32>
    %c9 = arith.constant 9 : index
    %c0_35 = arith.constant 0 : index
    %75 = vector.load %arg13[%c9, %c0_35] : memref<14x162xf32, #tpu.memory_space<vmem>>, vector<1x162xf32>
    tpu.vector_store %arg13[%c9, %c0_35], %74 {strides = array<i32>} : memref<14x162xf32, #tpu.memory_space<vmem>>, vector<1x162xf32>,
    %76 = vector.extract_strided_slice %35 {offsets = [20, 0], sizes = [1, 162], strides = [1, 1]} : vector<28x162xf32> to vector<1x162xf32>
    %77 = vector.extract_strided_slice %35 {offsets = [21, 0], sizes = [1, 162], strides = [1, 1]} : vector<28x162xf32> to vector<1x162xf32>
    %78 = arith.maximumf %76, %77 : vector<1x162xf32>
    %c10 = arith.constant 10 : index
    %c0_36 = arith.constant 0 : index
    %79 = vector.load %arg13[%c10, %c0_36] : memref<14x162xf32, #tpu.memory_space<vmem>>, vector<1x162xf32>
    tpu.vector_store %arg13[%c10, %c0_36], %78 {strides = array<i32>} : memref<14x162xf32, #tpu.memory_space<vmem>>, vector<1x162xf32>,
    %80 = vector.extract_strided_slice %35 {offsets = [22, 0], sizes = [1, 162], strides = [1, 1]} : vector<28x162xf32> to vector<1x162xf32>
    %81 = vector.extract_strided_slice %35 {offsets = [23, 0], sizes = [1, 162], strides = [1, 1]} : vector<28x162xf32> to vector<1x162xf32>
    %82 = arith.maximumf %80, %81 : vector<1x162xf32>
    %c11 = arith.constant 11 : index
    %c0_37 = arith.constant 0 : index
    %83 = vector.load %arg13[%c11, %c0_37] : memref<14x162xf32, #tpu.memory_space<vmem>>, vector<1x162xf32>
    tpu.vector_store %arg13[%c11, %c0_37], %82 {strides = array<i32>} : memref<14x162xf32, #tpu.memory_space<vmem>>, vector<1x162xf32>,
    %84 = vector.extract_strided_slice %35 {offsets = [24, 0], sizes = [1, 162], strides = [1, 1]} : vector<28x162xf32> to vector<1x162xf32>
    %85 = vector.extract_strided_slice %35 {offsets = [25, 0], sizes = [1, 162], strides = [1, 1]} : vector<28x162xf32> to vector<1x162xf32>
    %86 = arith.maximumf %84, %85 : vector<1x162xf32>
    %c12 = arith.constant 12 : index
    %c0_38 = arith.constant 0 : index
    %87 = vector.load %arg13[%c12, %c0_38] : memref<14x162xf32, #tpu.memory_space<vmem>>, vector<1x162xf32>
    tpu.vector_store %arg13[%c12, %c0_38], %86 {strides = array<i32>} : memref<14x162xf32, #tpu.memory_space<vmem>>, vector<1x162xf32>,
    %88 = vector.extract_strided_slice %35 {offsets = [26, 0], sizes = [1, 162], strides = [1, 1]} : vector<28x162xf32> to vector<1x162xf32>
    %89 = vector.extract_strided_slice %35 {offsets = [27, 0], sizes = [1, 162], strides = [1, 1]} : vector<28x162xf32> to vector<1x162xf32>
    %90 = arith.maximumf %88, %89 : vector<1x162xf32>
    %c13 = arith.constant 13 : index
    %c0_39 = arith.constant 0 : index
    %91 = vector.load %arg13[%c13, %c0_39] : memref<14x162xf32, #tpu.memory_space<vmem>>, vector<1x162xf32>
    tpu.vector_store %arg13[%c13, %c0_39], %90 {strides = array<i32>} : memref<14x162xf32, #tpu.memory_space<vmem>>, vector<1x162xf32>,
    %cst_40 = arith.constant 0.000000e+00 : f32
    %92 = vector.broadcast %cst_40 : f32 to vector<10x160xf32>
    %c0_41 = arith.constant 0 : index
    %c0_42 = arith.constant 0 : index
    %93 = vector.load %arg13[%c0_41, %c0_42] : memref<14x162xf32, #tpu.memory_space<vmem>>, vector<10x162xf32>
    %c0_43 = arith.constant 0 : index
    %c0_44 = arith.constant 0 : index
    %c0_45 = arith.constant 0 : index
    %94 = vector.load %arg4[%c0_43, %c0_44, %c0_45] : memref<5x162x160xf32, #tpu.memory_space<vmem>>, vector<1x162x160xf32>
    %95 = vector.shape_cast %94 : vector<1x162x160xf32> to vector<162x160xf32>
    %cst_46 = arith.constant dense<0.000000e+00> : vector<10x160xf32>
    %96 = tpu.matmul %93, %95, %cst_46 {dimension_numbers = #tpu.dot_dimension_numbers<[1], [0], [0], [1], [0, 0, 1, 1], [], []>} : vector<10x162xf32>, vector<162x160xf32>, vector<10x160xf32> -> vector<10x160xf32>
    %97 = arith.addf %92, %96 : vector<10x160xf32>
    %c1_47 = arith.constant 1 : index
    %c0_48 = arith.constant 0 : index
    %98 = vector.load %arg13[%c1_47, %c0_48] : memref<14x162xf32, #tpu.memory_space<vmem>>, vector<10x162xf32>
    %c1_49 = arith.constant 1 : index
    %c0_50 = arith.constant 0 : index
    %c0_51 = arith.constant 0 : index
    %99 = vector.load %arg4[%c1_49, %c0_50, %c0_51] : memref<5x162x160xf32, #tpu.memory_space<vmem>>, vector<1x162x160xf32>
    %100 = vector.shape_cast %99 : vector<1x162x160xf32> to vector<162x160xf32>
    %cst_52 = arith.constant dense<0.000000e+00> : vector<10x160xf32>
    %101 = tpu.matmul %98, %100, %cst_52 {dimension_numbers = #tpu.dot_dimension_numbers<[1], [0], [0], [1], [0, 0, 1, 1], [], []>} : vector<10x162xf32>, vector<162x160xf32>, vector<10x160xf32> -> vector<10x160xf32>
    %102 = arith.addf %97, %101 : vector<10x160xf32>
    %c2_53 = arith.constant 2 : index
    %c0_54 = arith.constant 0 : index
    %103 = vector.load %arg13[%c2_53, %c0_54] : memref<14x162xf32, #tpu.memory_space<vmem>>, vector<10x162xf32>
    %c2_55 = arith.constant 2 : index
    %c0_56 = arith.constant 0 : index
    %c0_57 = arith.constant 0 : index
    %104 = vector.load %arg4[%c2_55, %c0_56, %c0_57] : memref<5x162x160xf32, #tpu.memory_space<vmem>>, vector<1x162x160xf32>
    %105 = vector.shape_cast %104 : vector<1x162x160xf32> to vector<162x160xf32>
    %cst_58 = arith.constant dense<0.000000e+00> : vector<10x160xf32>
    %106 = tpu.matmul %103, %105, %cst_58 {dimension_numbers = #tpu.dot_dimension_numbers<[1], [0], [0], [1], [0, 0, 1, 1], [], []>} : vector<10x162xf32>, vector<162x160xf32>, vector<10x160xf32> -> vector<10x160xf32>
    %107 = arith.addf %102, %106 : vector<10x160xf32>
    %c3_59 = arith.constant 3 : index
    %c0_60 = arith.constant 0 : index
    %108 = vector.load %arg13[%c3_59, %c0_60] : memref<14x162xf32, #tpu.memory_space<vmem>>, vector<10x162xf32>
    %c3_61 = arith.constant 3 : index
    %c0_62 = arith.constant 0 : index
    %c0_63 = arith.constant 0 : index
    %109 = vector.load %arg4[%c3_61, %c0_62, %c0_63] : memref<5x162x160xf32, #tpu.memory_space<vmem>>, vector<1x162x160xf32>
    %110 = vector.shape_cast %109 : vector<1x162x160xf32> to vector<162x160xf32>
    %cst_64 = arith.constant dense<0.000000e+00> : vector<10x160xf32>
    %111 = tpu.matmul %108, %110, %cst_64 {dimension_numbers = #tpu.dot_dimension_numbers<[1], [0], [0], [1], [0, 0, 1, 1], [], []>} : vector<10x162xf32>, vector<162x160xf32>, vector<10x160xf32> -> vector<10x160xf32>
    %112 = arith.addf %107, %111 : vector<10x160xf32>
    %c4_65 = arith.constant 4 : index
    %c0_66 = arith.constant 0 : index
    %113 = vector.load %arg13[%c4_65, %c0_66] : memref<14x162xf32, #tpu.memory_space<vmem>>, vector<10x162xf32>
    %c4_67 = arith.constant 4 : index
    %c0_68 = arith.constant 0 : index
    %c0_69 = arith.constant 0 : index
    %114 = vector.load %arg4[%c4_67, %c0_68, %c0_69] : memref<5x162x160xf32, #tpu.memory_space<vmem>>, vector<1x162x160xf32>
    %115 = vector.shape_cast %114 : vector<1x162x160xf32> to vector<162x160xf32>
    %cst_70 = arith.constant dense<0.000000e+00> : vector<10x160xf32>
    %116 = tpu.matmul %113, %115, %cst_70 {dimension_numbers = #tpu.dot_dimension_numbers<[1], [0], [0], [1], [0, 0, 1, 1], [], []>} : vector<10x162xf32>, vector<162x160xf32>, vector<10x160xf32> -> vector<10x160xf32>
    %117 = arith.addf %112, %116 : vector<10x160xf32>
    %c0_71 = arith.constant 0 : index
    %c0_72 = arith.constant 0 : index
    %118 = vector.load %arg5[%c0_71, %c0_72] : memref<1x160xf32, #tpu.memory_space<vmem>>, vector<1x160xf32>
    %119 = vector.broadcast %118 : vector<1x160xf32> to vector<10x160xf32>
    %120 = arith.addf %117, %119 : vector<10x160xf32>
    %cst_73 = arith.constant 0.000000e+00 : f32
    %121 = vector.broadcast %cst_73 : f32 to vector<10x160xf32>
    %122 = arith.maximumf %120, %121 : vector<10x160xf32>
    %123 = vector.extract_strided_slice %122 {offsets = [0, 0], sizes = [10, 144], strides = [1, 1]} : vector<10x160xf32> to vector<10x144xf32>
    %124 = vector.extract_strided_slice %122 {offsets = [0, 16], sizes = [10, 144], strides = [1, 1]} : vector<10x160xf32> to vector<10x144xf32>
    %125 = arith.maximumf %123, %124 : vector<10x144xf32>
    %cst_74 = arith.constant 0.000000e+00 : f32
    %126 = vector.broadcast %cst_74 : f32 to vector<1x120xf32>
    %127 = vector.extract_strided_slice %125 {offsets = [0, 0], sizes = [1, 144], strides = [1, 1]} : vector<10x144xf32> to vector<1x144xf32>
    %128 = vector.extract_strided_slice %125 {offsets = [1, 0], sizes = [1, 144], strides = [1, 1]} : vector<10x144xf32> to vector<1x144xf32>
    %129 = arith.maximumf %127, %128 : vector<1x144xf32>
    %c0_75 = arith.constant 0 : index
    %c0_76 = arith.constant 0 : index
    %c0_77 = arith.constant 0 : index
    %130 = vector.load %arg6[%c0_75, %c0_76, %c0_77] : memref<5x144x120xf32, #tpu.memory_space<vmem>>, vector<1x144x120xf32>
    %131 = vector.shape_cast %130 : vector<1x144x120xf32> to vector<144x120xf32>
    %cst_78 = arith.constant dense<0.000000e+00> : vector<1x120xf32>
    %132 = tpu.matmul %129, %131, %cst_78 {dimension_numbers = #tpu.dot_dimension_numbers<[1], [0], [0], [1], [0, 0, 1, 1], [], []>} : vector<1x144xf32>, vector<144x120xf32>, vector<1x120xf32> -> vector<1x120xf32>
    %133 = arith.addf %126, %132 : vector<1x120xf32>
    %134 = vector.extract_strided_slice %125 {offsets = [2, 0], sizes = [1, 144], strides = [1, 1]} : vector<10x144xf32> to vector<1x144xf32>
    %135 = vector.extract_strided_slice %125 {offsets = [3, 0], sizes = [1, 144], strides = [1, 1]} : vector<10x144xf32> to vector<1x144xf32>
    %136 = arith.maximumf %134, %135 : vector<1x144xf32>
    %c1_79 = arith.constant 1 : index
    %c0_80 = arith.constant 0 : index
    %c0_81 = arith.constant 0 : index
    %137 = vector.load %arg6[%c1_79, %c0_80, %c0_81] : memref<5x144x120xf32, #tpu.memory_space<vmem>>, vector<1x144x120xf32>
    %138 = vector.shape_cast %137 : vector<1x144x120xf32> to vector<144x120xf32>
    %cst_82 = arith.constant dense<0.000000e+00> : vector<1x120xf32>
    %139 = tpu.matmul %136, %138, %cst_82 {dimension_numbers = #tpu.dot_dimension_numbers<[1], [0], [0], [1], [0, 0, 1, 1], [], []>} : vector<1x144xf32>, vector<144x120xf32>, vector<1x120xf32> -> vector<1x120xf32>
    %140 = arith.addf %133, %139 : vector<1x120xf32>
    %141 = vector.extract_strided_slice %125 {offsets = [4, 0], sizes = [1, 144], strides = [1, 1]} : vector<10x144xf32> to vector<1x144xf32>
    %142 = vector.extract_strided_slice %125 {offsets = [5, 0], sizes = [1, 144], strides = [1, 1]} : vector<10x144xf32> to vector<1x144xf32>
    %143 = arith.maximumf %141, %142 : vector<1x144xf32>
    %c2_83 = arith.constant 2 : index
    %c0_84 = arith.constant 0 : index
    %c0_85 = arith.constant 0 : index
    %144 = vector.load %arg6[%c2_83, %c0_84, %c0_85] : memref<5x144x120xf32, #tpu.memory_space<vmem>>, vector<1x144x120xf32>
    %145 = vector.shape_cast %144 : vector<1x144x120xf32> to vector<144x120xf32>
    %cst_86 = arith.constant dense<0.000000e+00> : vector<1x120xf32>
    %146 = tpu.matmul %143, %145, %cst_86 {dimension_numbers = #tpu.dot_dimension_numbers<[1], [0], [0], [1], [0, 0, 1, 1], [], []>} : vector<1x144xf32>, vector<144x120xf32>, vector<1x120xf32> -> vector<1x120xf32>
    %147 = arith.addf %140, %146 : vector<1x120xf32>
    %148 = vector.extract_strided_slice %125 {offsets = [6, 0], sizes = [1, 144], strides = [1, 1]} : vector<10x144xf32> to vector<1x144xf32>
    %149 = vector.extract_strided_slice %125 {offsets = [7, 0], sizes = [1, 144], strides = [1, 1]} : vector<10x144xf32> to vector<1x144xf32>
    %150 = arith.maximumf %148, %149 : vector<1x144xf32>
    %c3_87 = arith.constant 3 : index
    %c0_88 = arith.constant 0 : index
    %c0_89 = arith.constant 0 : index
    %151 = vector.load %arg6[%c3_87, %c0_88, %c0_89] : memref<5x144x120xf32, #tpu.memory_space<vmem>>, vector<1x144x120xf32>
    %152 = vector.shape_cast %151 : vector<1x144x120xf32> to vector<144x120xf32>
    %cst_90 = arith.constant dense<0.000000e+00> : vector<1x120xf32>
    %153 = tpu.matmul %150, %152, %cst_90 {dimension_numbers = #tpu.dot_dimension_numbers<[1], [0], [0], [1], [0, 0, 1, 1], [], []>} : vector<1x144xf32>, vector<144x120xf32>, vector<1x120xf32> -> vector<1x120xf32>
    %154 = arith.addf %147, %153 : vector<1x120xf32>
    %155 = vector.extract_strided_slice %125 {offsets = [8, 0], sizes = [1, 144], strides = [1, 1]} : vector<10x144xf32> to vector<1x144xf32>
    %156 = vector.extract_strided_slice %125 {offsets = [9, 0], sizes = [1, 144], strides = [1, 1]} : vector<10x144xf32> to vector<1x144xf32>
    %157 = arith.maximumf %155, %156 : vector<1x144xf32>
    %c4_91 = arith.constant 4 : index
    %c0_92 = arith.constant 0 : index
    %c0_93 = arith.constant 0 : index
    %158 = vector.load %arg6[%c4_91, %c0_92, %c0_93] : memref<5x144x120xf32, #tpu.memory_space<vmem>>, vector<1x144x120xf32>
    %159 = vector.shape_cast %158 : vector<1x144x120xf32> to vector<144x120xf32>
    %cst_94 = arith.constant dense<0.000000e+00> : vector<1x120xf32>
    %160 = tpu.matmul %157, %159, %cst_94 {dimension_numbers = #tpu.dot_dimension_numbers<[1], [0], [0], [1], [0, 0, 1, 1], [], []>} : vector<1x144xf32>, vector<144x120xf32>, vector<1x120xf32> -> vector<1x120xf32>
    %161 = arith.addf %154, %160 : vector<1x120xf32>
    %c0_95 = arith.constant 0 : index
    %c0_96 = arith.constant 0 : index
    %162 = vector.load %arg7[%c0_95, %c0_96] : memref<1x120xf32, #tpu.memory_space<vmem>>, vector<1x120xf32>
    %163 = arith.addf %161, %162 : vector<1x120xf32>
    %cst_97 = arith.constant 0.000000e+00 : f32
    %164 = vector.broadcast %cst_97 : f32 to vector<1x120xf32>
    %165 = arith.maximumf %163, %164 : vector<1x120xf32>
    %c0_98 = arith.constant 0 : index
    %c0_99 = arith.constant 0 : index
    %166 = vector.load %arg8[%c0_98, %c0_99] : memref<120x84xf32, #tpu.memory_space<vmem>>, vector<120x84xf32>
    %cst_100 = arith.constant dense<0.000000e+00> : vector<1x84xf32>
    %167 = tpu.matmul %165, %166, %cst_100 {dimension_numbers = #tpu.dot_dimension_numbers<[1], [0], [0], [1], [0, 0, 1, 1], [], []>} : vector<1x120xf32>, vector<120x84xf32>, vector<1x84xf32> -> vector<1x84xf32>
    %c0_101 = arith.constant 0 : index
    %c0_102 = arith.constant 0 : index
    %168 = vector.load %arg9[%c0_101, %c0_102] : memref<1x84xf32, #tpu.memory_space<vmem>>, vector<1x84xf32>
    %169 = arith.addf %167, %168 : vector<1x84xf32>
    %cst_103 = arith.constant 0.000000e+00 : f32
    %170 = vector.broadcast %cst_103 : f32 to vector<1x84xf32>
    %171 = arith.maximumf %169, %170 : vector<1x84xf32>
    %c0_104 = arith.constant 0 : index
    %c0_105 = arith.constant 0 : index
    %172 = vector.load %arg10[%c0_104, %c0_105] : memref<84x10xf32, #tpu.memory_space<vmem>>, vector<84x10xf32>
    %cst_106 = arith.constant dense<0.000000e+00> : vector<1x10xf32>
    %173 = tpu.matmul %171, %172, %cst_106 {dimension_numbers = #tpu.dot_dimension_numbers<[1], [0], [0], [1], [0, 0, 1, 1], [], []>} : vector<1x84xf32>, vector<84x10xf32>, vector<1x10xf32> -> vector<1x10xf32>
    %c0_107 = arith.constant 0 : index
    %c0_108 = arith.constant 0 : index
    %174 = vector.load %arg11[%c0_107, %c0_108] : memref<1x10xf32, #tpu.memory_space<vmem>>, vector<1x10xf32>
    %175 = arith.addf %173, %174 : vector<1x10xf32>
    %c0_109 = arith.constant 0 : index
    %c0_110 = arith.constant 0 : index
    %c0_111 = arith.constant 0 : index
    %176 = vector.load %arg12[%c0_109, %c0_110, %c0_111] : memref<1x1x10xf32, #tpu.memory_space<vmem>>, vector<1x1x10xf32>
    %177 = vector.shape_cast %176 : vector<1x1x10xf32> to vector<1x10xf32>
    %178 = vector.shape_cast %175 : vector<1x10xf32> to vector<1x1x10xf32>
    tpu.vector_store %arg12[%c0_109, %c0_110, %c0_111], %178 {strides = array<i32>} : memref<1x1x10xf32, #tpu.memory_space<vmem>>, vector<1x1x10xf32>,
    return
  }
  func.func @transform_0(%arg0: i32) -> (i32, i32, i32) {
    %c0_i32 = arith.constant 0 : i32
    %c0_i32_0 = arith.constant 0 : i32
    %c0_i32_1 = arith.constant 0 : i32
    return %arg0, %c0_i32, %c0_i32_0 : i32, i32, i32
  }
  func.func @transform_1(%arg0: i32) -> (i32, i32, i32) {
    %c0_i32 = arith.constant 0 : i32
    %c0_i32_0 = arith.constant 0 : i32
    %c0_i32_1 = arith.constant 0 : i32
    %c0_i32_2 = arith.constant 0 : i32
    return %c0_i32, %c0_i32_0, %c0_i32_1 : i32, i32, i32
  }
  func.func @transform_2(%arg0: i32) -> (i32, i32) {
    %c0_i32 = arith.constant 0 : i32
    %c0_i32_0 = arith.constant 0 : i32
    %c0_i32_1 = arith.constant 0 : i32
    return %c0_i32, %c0_i32_0 : i32, i32
  }
  func.func @transform_3(%arg0: i32) -> (i32, i32, i32) {
    %c0_i32 = arith.constant 0 : i32
    %c0_i32_0 = arith.constant 0 : i32
    %c0_i32_1 = arith.constant 0 : i32
    %c0_i32_2 = arith.constant 0 : i32
    return %c0_i32, %c0_i32_0, %c0_i32_1 : i32, i32, i32
  }
  func.func @transform_4(%arg0: i32) -> (i32, i32) {
    %c0_i32 = arith.constant 0 : i32
    %c0_i32_0 = arith.constant 0 : i32
    %c0_i32_1 = arith.constant 0 : i32
    return %c0_i32, %c0_i32_0 : i32, i32
  }
  func.func @transform_5(%arg0: i32) -> (i32, i32, i32) {
    %c0_i32 = arith.constant 0 : i32
    %c0_i32_0 = arith.constant 0 : i32
    %c0_i32_1 = arith.constant 0 : i32
    %c0_i32_2 = arith.constant 0 : i32
    return %c0_i32, %c0_i32_0, %c0_i32_1 : i32, i32, i32
  }
  func.func @transform_6(%arg0: i32) -> (i32, i32) {
    %c0_i32 = arith.constant 0 : i32
    %c0_i32_0 = arith.constant 0 : i32
    %c0_i32_1 = arith.constant 0 : i32
    return %c0_i32, %c0_i32_0 : i32, i32
  }
  func.func @transform_7(%arg0: i32) -> (i32, i32) {
    %c0_i32 = arith.constant 0 : i32
    %c0_i32_0 = arith.constant 0 : i32
    %c0_i32_1 = arith.constant 0 : i32
    return %c0_i32, %c0_i32_0 : i32, i32
  }
  func.func @transform_8(%arg0: i32) -> (i32, i32) {
    %c0_i32 = arith.constant 0 : i32
    %c0_i32_0 = arith.constant 0 : i32
    %c0_i32_1 = arith.constant 0 : i32
    return %c0_i32, %c0_i32_0 : i32, i32
  }
  func.func @transform_9(%arg0: i32) -> (i32, i32) {
    %c0_i32 = arith.constant 0 : i32
    %c0_i32_0 = arith.constant 0 : i32
    %c0_i32_1 = arith.constant 0 : i32
    return %c0_i32, %c0_i32_0 : i32, i32
  }
  func.func @transform_10(%arg0: i32) -> (i32, i32) {
    %c0_i32 = arith.constant 0 : i32
    %c0_i32_0 = arith.constant 0 : i32
    %c0_i32_1 = arith.constant 0 : i32
    return %c0_i32, %c0_i32_0 : i32, i32
  }
  func.func @transform_11(%arg0: i32) -> (i32, i32, i32) {
    %c0_i32 = arith.constant 0 : i32
    %c0_i32_0 = arith.constant 0 : i32
    %c0_i32_1 = arith.constant 0 : i32
    return %arg0, %c0_i32, %c0_i32_0 : i32, i32, i32
  }
}

</mosaic_0001>

<llo_original>
// kernel: net_forward.1
$region0: #{net_forward.1}
  #allocation0 [shape = 'u32[]', space=smem, size = 0x4, offset = 0x4, fixed_abs, tag = 'smem constant byte address 0x4 - core index']
  #allocation1 [shape = 'u32[72,128]{1,0:T(1,128)}', space=vmem, size = 0x9000, scoped, tag = 'internal scratch']
  #allocation2 [shape = 'f32[14,162]{1,0:T(8,128)}', space=vmem, size = 0x4000, scoped, tag = 'scratch operand']
  %s0 = inlined_call_operand.vmem [shape: f32[2,32,32], index: 0, kind: input, shape index: {}]
  %s1 = inlined_call_operand.vmem [shape: f32[5,32,168], index: 1, kind: input, shape index: {}]
  %s2 = inlined_call_operand.vmem [shape: f32[1,168], index: 2, kind: input, shape index: {}]
  %s3 = inlined_call_operand.vmem [shape: f32[5,162,160], index: 3, kind: input, shape index: {}]
  %s4 = inlined_call_operand.vmem [shape: f32[1,160], index: 4, kind: input, shape index: {}]
  %s5 = inlined_call_operand.vmem [shape: f32[5,144,120], index: 5, kind: input, shape index: {}]
  %s6 = inlined_call_operand.vmem [shape: f32[1,120], index: 6, kind: input, shape index: {}]
  %s7 = inlined_call_operand.vmem [shape: f32[120,84], index: 7, kind: input, shape index: {}]
  %s8 = inlined_call_operand.vmem [shape: f32[1,84], index: 8, kind: input, shape index: {}]
  %s9 = inlined_call_operand.vmem [shape: f32[84,10], index: 9, kind: input, shape index: {}]
  %s10 = inlined_call_operand.vmem [shape: f32[1,10], index: 10, kind: input, shape index: {}]
  %s11 = inlined_call_operand.hbm [shape: f32[2,1,10], index: 11, kind: output, shape index: {}]
  %s12 = sld [smem:[#allocation0]]
  $region77: #{net_forward.1} parent=0
    _
  %s14 = ssub.s32 1, %s12
  %s15 = scalar_select 0, %s14, %s12
  $region1: #{net_forward.1} parent=0
    #allocation3 [shape = 'u8[1024]{0}', space=vmem, size = 0x400, scoped, tag = 'output window, operand 0']
    #allocation4 [shape = 's32[2]{0}', space=sflag, size = 0x8, scoped, tag = 'scoped memory for net_forward.1']
    %16 = vsyncpa [#allocation4], 0
    %s17 = scalar_lea.sflag [#allocation4], 1
    %18 = vsyncpa %s17, 0
    loop: start=0, step=1, limit=4
    $region2: #{net_forward.1} parent=1 // loop_pre_header
      _
    $region3: #{net_forward.1} parent=1 // loop_header
      %s20 = sphi 0, %s24
      %p21 = scmp.ge.s32.totalorder %s20, 4
      %s30 = sphi 0, %s32
      %s33 = sphi 0, %s30
      %s34 = sphi 0, %s33
      %s50 = sphi 0, %s34
      %s54 = sphi 0, %s54
      %s56 = sphi 0, %s54
      %s57 = sphi 0, %s56
      %s71 = sphi 0, %s57
      %s75 = sphi 0, %s75
      %s77 = sphi 0, %s75
      %s78 = sphi 0, %s77
      %s92 = sphi 0, %s78
      %s96 = sphi 0, %s96
      %s98 = sphi 0, %s96
      %s99 = sphi 0, %s98
      %s113 = sphi 0, %s99
      %s117 = sphi 0, %s117
      %s119 = sphi 0, %s117
      %s120 = sphi 0, %s119
      %s134 = sphi 0, %s120
      %s138 = sphi 0, %s138
      %s140 = sphi 0, %s138
      %s141 = sphi 0, %s140
      %s155 = sphi 0, %s141
      %s159 = sphi 0, %s159
      %s161 = sphi 0, %s159
      %s162 = sphi 0, %s161
      %s176 = sphi 0, %s162
      %s180 = sphi 0, %s180
      %s182 = sphi 0, %s180
      %s183 = sphi 0, %s182
      %s197 = sphi 0, %s183
      %s201 = sphi 0, %s201
      %s203 = sphi 0, %s201
      %s204 = sphi 0, %s203
      %s218 = sphi 0, %s204
      %s222 = sphi 0, %s222
      %s224 = sphi 0, %s222
      %s225 = sphi 0, %s224
      %s239 = sphi 0, %s225
      %s243 = sphi 0, %s243
      %s245 = sphi 0, %s243
      %s246 = sphi 0, %s245
      %s260 = sphi 0, %s246
      %s266 = sphi 0, %s268
      %s269 = sphi 0, %s266
      %s270 = sphi 0, %s269
      %s286 = sphi 0, %s270
    $region4: #{net_forward.1} parent=1 // loop_header_branch
      %23 = sbr.rel (%p21) target = $region8
    $region5: #{net_forward.1} parent=1 // loop_body
      %s25 = ssub.s32 %s20, 1
      %s26 = ssub.s32 %s20, 2
      %s27 = sadd.s32 %s20, 1
      %s28 = ssub.s32 %s20, %s27
      %p29 = scmp.eq.s32.totalorder %s28, 0
      %s31 = sadd.s32 %s30, 1
      %s32 = scalar_select %p29, %s30, %s31
      %p35 = pneg %p29
      %p36 = scmp.eq.s32.totalorder %s20, 1
      %p37 = por %p35, %p36
      %p38 = scmp.ne.s32.totalorder %s30, %s33
      %p39 = scmp.eq.s32.totalorder %s20, 0
      %p40 = por %p38, %p39
      %p41 = scmp.ne.s32.totalorder %s30, %s33
      %p42 = scmp.eq.s32.totalorder %s25, 1
      %p43 = por %p41, %p42
      %p44 = scmp.ne.s32.totalorder %s33, %s34
      %p45 = scmp.eq.s32.totalorder %s25, 0
      %p46 = por %p44, %p45
      %p47 = scmp.ne.s32.totalorder %s33, %s34
      %p48 = scmp.eq.s32.totalorder %s26, 1
      %p49 = por %p47, %p48
      %p51 = scmp.ne.s32.totalorder %s34, %s50
      %p52 = scmp.eq.s32.totalorder %s26, 0
      %p53 = por %p51, %p52
      %s55 = sadd.s32 %s54, 1
      %p58 = scmp.eq.s32.totalorder %s20, 1
      %p59 = scmp.ne.s32.totalorder %s54, %s56
      %p60 = scmp.eq.s32.totalorder %s20, 0
      %p61 = por %p59, %p60
      %p62 = scmp.ne.s32.totalorder %s54, %s56
      %p63 = scmp.eq.s32.totalorder %s25, 1
      %p64 = por %p62, %p63
      %p65 = scmp.ne.s32.totalorder %s56, %s57
      %p66 = scmp.eq.s32.totalorder %s25, 0
      %p67 = por %p65, %p66
      %p68 = scmp.ne.s32.totalorder %s56, %s57
      %p69 = scmp.eq.s32.totalorder %s26, 1
      %p70 = por %p68, %p69
      %p72 = scmp.ne.s32.totalorder %s57, %s71
      %p73 = scmp.eq.s32.totalorder %s26, 0
      %p74 = por %p72, %p73
      %s76 = sadd.s32 %s75, 1
      %p79 = scmp.eq.s32.totalorder %s20, 1
      %p80 = scmp.ne.s32.totalorder %s75, %s77
      %p81 = scmp.eq.s32.totalorder %s20, 0
      %p82 = por %p80, %p81
      %p83 = scmp.ne.s32.totalorder %s75, %s77
      %p84 = scmp.eq.s32.totalorder %s25, 1
      %p85 = por %p83, %p84
      %p86 = scmp.ne.s32.totalorder %s77, %s78
      %p87 = scmp.eq.s32.totalorder %s25, 0
      %p88 = por %p86, %p87
      %p89 = scmp.ne.s32.totalorder %s77, %s78
      %p90 = scmp.eq.s32.totalorder %s26, 1
      %p91 = por %p89, %p90
      %p93 = scmp.ne.s32.totalorder %s78, %s92
      %p94 = scmp.eq.s32.totalorder %s26, 0
      %p95 = por %p93, %p94
      %s97 = sadd.s32 %s96, 1
      %p100 = scmp.eq.s32.totalorder %s20, 1
      %p101 = scmp.ne.s32.totalorder %s96, %s98
      %p102 = scmp.eq.s32.totalorder %s20, 0
      %p103 = por %p101, %p102
      %p104 = scmp.ne.s32.totalorder %s96, %s98
      %p105 = scmp.eq.s32.totalorder %s25, 1
      %p106 = por %p104, %p105
      %p107 = scmp.ne.s32.totalorder %s98, %s99
      %p108 = scmp.eq.s32.totalorder %s25, 0
      %p109 = por %p107, %p108
      %p110 = scmp.ne.s32.totalorder %s98, %s99
      %p111 = scmp.eq.s32.totalorder %s26, 1
      %p112 = por %p110, %p111
      %p114 = scmp.ne.s32.totalorder %s99, %s113
      %p115 = scmp.eq.s32.totalorder %s26, 0
      %p116 = por %p114, %p115
      %s118 = sadd.s32 %s117, 1
      %p121 = scmp.eq.s32.totalorder %s20, 1
      %p122 = scmp.ne.s32.totalorder %s117, %s119
      %p123 = scmp.eq.s32.totalorder %s20, 0
      %p124 = por %p122, %p123
      %p125 = scmp.ne.s32.totalorder %s117, %s119
      %p126 = scmp.eq.s32.totalorder %s25, 1
      %p127 = por %p125, %p126
      %p128 = scmp.ne.s32.totalorder %s119, %s120
      %p129 = scmp.eq.s32.totalorder %s25, 0
      %p130 = por %p128, %p129
      %p131 = scmp.ne.s32.totalorder %s119, %s120
      %p132 = scmp.eq.s32.totalorder %s26, 1
      %p133 = por %p131, %p132
      %p135 = scmp.ne.s32.totalorder %s120, %s134
      %p136 = scmp.eq.s32.totalorder %s26, 0
      %p137 = por %p135, %p136
      %s139 = sadd.s32 %s138, 1
      %p142 = scmp.eq.s32.totalorder %s20, 1
      %p143 = scmp.ne.s32.totalorder %s138, %s140
      %p144 = scmp.eq.s32.totalorder %s20, 0
      %p145 = por %p143, %p144
      %p146 = scmp.ne.s32.totalorder %s138, %s140
      %p147 = scmp.eq.s32.totalorder %s25, 1
      %p148 = por %p146, %p147
      %p149 = scmp.ne.s32.totalorder %s140, %s141
      %p150 = scmp.eq.s32.totalorder %s25, 0
      %p151 = por %p149, %p150
      %p152 = scmp.ne.s32.totalorder %s140, %s141
      %p153 = scmp.eq.s32.totalorder %s26, 1
      %p154 = por %p152, %p153
      %p156 = scmp.ne.s32.totalorder %s141, %s155
      %p157 = scmp.eq.s32.totalorder %s26, 0
      %p158 = por %p156, %p157
      %s160 = sadd.s32 %s159, 1
      %p163 = scmp.eq.s32.totalorder %s20, 1
      %p164 = scmp.ne.s32.totalorder %s159, %s161
      %p165 = scmp.eq.s32.totalorder %s20, 0
      %p166 = por %p164, %p165
      %p167 = scmp.ne.s32.totalorder %s159, %s161
      %p168 = scmp.eq.s32.totalorder %s25, 1
      %p169 = por %p167, %p168
      %p170 = scmp.ne.s32.totalorder %s161, %s162
      %p171 = scmp.eq.s32.totalorder %s25, 0
      %p172 = por %p170, %p171
      %p173 = scmp.ne.s32.totalorder %s161, %s162
      %p174 = scmp.eq.s32.totalorder %s26, 1
      %p175 = por %p173, %p174
      %p177 = scmp.ne.s32.totalorder %s162, %s176
      %p178 = scmp.eq.s32.totalorder %s26, 0
      %p179 = por %p177, %p178
      %s181 = sadd.s32 %s180, 1
      %p184 = scmp.eq.s32.totalorder %s20, 1
      %p185 = scmp.ne.s32.totalorder %s180, %s182
      %p186 = scmp.eq.s32.totalorder %s20, 0
      %p187 = por %p185, %p186
      %p188 = scmp.ne.s32.totalorder %s180, %s182
      %p189 = scmp.eq.s32.totalorder %s25, 1
      %p190 = por %p188, %p189
      %p191 = scmp.ne.s32.totalorder %s182, %s183
      %p192 = scmp.eq.s32.totalorder %s25, 0
      %p193 = por %p191, %p192
      %p194 = scmp.ne.s32.totalorder %s182, %s183
      %p195 = scmp.eq.s32.totalorder %s26, 1
      %p196 = por %p194, %p195
      %p198 = scmp.ne.s32.totalorder %s183, %s197
      %p199 = scmp.eq.s32.totalorder %s26, 0
      %p200 = por %p198, %p199
      %s202 = sadd.s32 %s201, 1
      %p205 = scmp.eq.s32.totalorder %s20, 1
      %p206 = scmp.ne.s32.totalorder %s201, %s203
      %p207 = scmp.eq.s32.totalorder %s20, 0
      %p208 = por %p206, %p207
      %p209 = scmp.ne.s32.totalorder %s201, %s203
      %p210 = scmp.eq.s32.totalorder %s25, 1
      %p211 = por %p209, %p210
      %p212 = scmp.ne.s32.totalorder %s203, %s204
      %p213 = scmp.eq.s32.totalorder %s25, 0
      %p214 = por %p212, %p213
      %p215 = scmp.ne.s32.totalorder %s203, %s204
      %p216 = scmp.eq.s32.totalorder %s26, 1
      %p217 = por %p215, %p216
      %p219 = scmp.ne.s32.totalorder %s204, %s218
      %p220 = scmp.eq.s32.totalorder %s26, 0
      %p221 = por %p219, %p220
      %s223 = sadd.s32 %s222, 1
      %p226 = scmp.eq.s32.totalorder %s20, 1
      %p227 = scmp.ne.s32.totalorder %s222, %s224
      %p228 = scmp.eq.s32.totalorder %s20, 0
      %p229 = por %p227, %p228
      %p230 = scmp.ne.s32.totalorder %s222, %s224
      %p231 = scmp.eq.s32.totalorder %s25, 1
      %p232 = por %p230, %p231
      %p233 = scmp.ne.s32.totalorder %s224, %s225
      %p234 = scmp.eq.s32.totalorder %s25, 0
      %p235 = por %p233, %p234
      %p236 = scmp.ne.s32.totalorder %s224, %s225
      %p237 = scmp.eq.s32.totalorder %s26, 1
      %p238 = por %p236, %p237
      %p240 = scmp.ne.s32.totalorder %s225, %s239
      %p241 = scmp.eq.s32.totalorder %s26, 0
      %p242 = por %p240, %p241
      %s244 = sadd.s32 %s243, 1
      %p247 = scmp.eq.s32.totalorder %s20, 1
      %p248 = scmp.ne.s32.totalorder %s243, %s245
      %p249 = scmp.eq.s32.totalorder %s20, 0
      %p250 = por %p248, %p249
      %p251 = scmp.ne.s32.totalorder %s243, %s245
      %p252 = scmp.eq.s32.totalorder %s25, 1
      %p253 = por %p251, %p252
      %p254 = scmp.ne.s32.totalorder %s245, %s246
      %p255 = scmp.eq.s32.totalorder %s25, 0
      %p256 = por %p254, %p255
      %p257 = scmp.ne.s32.totalorder %s245, %s246
      %p258 = scmp.eq.s32.totalorder %s26, 1
      %p259 = por %p257, %p258
      %p261 = scmp.ne.s32.totalorder %s246, %s260
      %p262 = scmp.eq.s32.totalorder %s26, 0
      %p263 = por %p261, %p262
      %s264 = ssub.s32 %s20, %s27
      %p265 = scmp.eq.s32.totalorder %s264, 0
      %s267 = sadd.s32 %s266, 1
      %s268 = scalar_select %p265, %s266, %s267
      %p271 = pneg %p265
      %p272 = scmp.eq.s32.totalorder %s20, 1
      %p273 = por %p271, %p272
      %p274 = scmp.ne.s32.totalorder %s266, %s269
      %p275 = scmp.eq.s32.totalorder %s20, 0
      %p276 = por %p274, %p275
      %p277 = scmp.ne.s32.totalorder %s266, %s269
      %p278 = scmp.eq.s32.totalorder %s25, 1
      %p279 = por %p277, %p278
      %p280 = scmp.ne.s32.totalorder %s269, %s270
      %p281 = scmp.eq.s32.totalorder %s25, 0
      %p282 = por %p280, %p281
      %p283 = scmp.ne.s32.totalorder %s269, %s270
      %p284 = scmp.eq.s32.totalorder %s26, 1
      %p285 = por %p283, %p284
      %p287 = scmp.ne.s32.totalorder %s270, %s286
      %p288 = scmp.eq.s32.totalorder %s26, 0
      %p289 = por %p287, %p288
      %p290 = scmp.le.s32.totalorder 1, %s20
      %p291 = scmp.lt.s32.totalorder %s20, 3
      %p292 = pnand %p290, %p291
      %p293 = pneg %p292
      // Predicated region
      $region9: #{net_forward.1} parent=5 // pred_check
        _
      $region10: #{net_forward.1} parent=5 // pred_check_branch
        %295 = sbr.rel (%p292) target = $region12
      $region11: #{net_forward.1} parent=5 // pred_region
        %s296 = ssub.s32 %s20, 1
        // Predicated region
        $region13: #{net_forward.1} parent=11 // pred_check
          %p297 = pneg %p67
        $region14: #{net_forward.1} parent=11 // pred_check_branch
          %299 = sbr.rel (%p297) target = $region16
        $region15: #{net_forward.1} parent=11 // pred_region
          _
        $region16: #{net_forward.1} parent=11 // pred_fallthru
          _
        // Predicated region
        $region17: #{net_forward.1} parent=11 // pred_check
          %p300 = pneg %p88
        $region18: #{net_forward.1} parent=11 // pred_check_branch
          %302 = sbr.rel (%p300) target = $region20
        $region19: #{net_forward.1} parent=11 // pred_region
          _
        $region20: #{net_forward.1} parent=11 // pred_fallthru
          _
        // Predicated region
        $region21: #{net_forward.1} parent=11 // pred_check
          %p303 = pneg %p109
        $region22: #{net_forward.1} parent=11 // pred_check_branch
          %305 = sbr.rel (%p303) target = $region24
        $region23: #{net_forward.1} parent=11 // pred_region
          _
        $region24: #{net_forward.1} parent=11 // pred_fallthru
          _
        // Predicated region
        $region25: #{net_forward.1} parent=11 // pred_check
          %p306 = pneg %p130
        $region26: #{net_forward.1} parent=11 // pred_check_branch
          %308 = sbr.rel (%p306) target = $region28
        $region27: #{net_forward.1} parent=11 // pred_region
          _
        $region28: #{net_forward.1} parent=11 // pred_fallthru
          _
        // Predicated region
        $region29: #{net_forward.1} parent=11 // pred_check
          %p309 = pneg %p151
        $region30: #{net_forward.1} parent=11 // pred_check_branch
          %311 = sbr.rel (%p309) target = $region32
        $region31: #{net_forward.1} parent=11 // pred_region
          _
        $region32: #{net_forward.1} parent=11 // pred_fallthru
          _
        // Predicated region
        $region33: #{net_forward.1} parent=11 // pred_check
          %p312 = pneg %p172
        $region34: #{net_forward.1} parent=11 // pred_check_branch
          %314 = sbr.rel (%p312) target = $region36
        $region35: #{net_forward.1} parent=11 // pred_region
          _
        $region36: #{net_forward.1} parent=11 // pred_fallthru
          _
        // Predicated region
        $region37: #{net_forward.1} parent=11 // pred_check
          %p315 = pneg %p193
        $region38: #{net_forward.1} parent=11 // pred_check_branch
          %317 = sbr.rel (%p315) target = $region40
        $region39: #{net_forward.1} parent=11 // pred_region
          _
        $region40: #{net_forward.1} parent=11 // pred_fallthru
          _
        // Predicated region
        $region41: #{net_forward.1} parent=11 // pred_check
          %p318 = pneg %p214
        $region42: #{net_forward.1} parent=11 // pred_check_branch
          %320 = sbr.rel (%p318) target = $region44
        $region43: #{net_forward.1} parent=11 // pred_region
          _
        $region44: #{net_forward.1} parent=11 // pred_fallthru
          _
        // Predicated region
        $region45: #{net_forward.1} parent=11 // pred_check
          %p321 = pneg %p235
        $region46: #{net_forward.1} parent=11 // pred_check_branch
          %323 = sbr.rel (%p321) target = $region48
        $region47: #{net_forward.1} parent=11 // pred_region
          _
        $region48: #{net_forward.1} parent=11 // pred_fallthru
          _
        // Predicated region
        $region49: #{net_forward.1} parent=11 // pred_check
          %p324 = pneg %p256
        $region50: #{net_forward.1} parent=11 // pred_check_branch
          %326 = sbr.rel (%p324) target = $region52
        $region51: #{net_forward.1} parent=11 // pred_region
          _
        $region52: #{net_forward.1} parent=11 // pred_fallthru
          _
      $region12: #{net_forward.1} parent=5 // pred_fallthru
        _
      %p327 = scmp.lt.s32.totalorder %s20, 2
      // Predicated region
      $region53: #{net_forward.1} parent=5 // pred_check
        %p328 = pneg %p327
      $region54: #{net_forward.1} parent=5 // pred_check_branch
        %330 = sbr.rel (%p328) target = $region56
      $region55: #{net_forward.1} parent=5 // pred_region
        // Predicated region
        $region57: #{net_forward.1} parent=55 // pred_check
          %p331 = pneg %p40
        $region58: #{net_forward.1} parent=55 // pred_check_branch
          %333 = sbr.rel (%p331) target = $region60
        $region59: #{net_forward.1} parent=55 // pred_region
          %p334 = scmp.lt.s32.totalorder %s20, 1
          %s335 = scalar_select %p334, %s20, 1
          %s336 = smul.addr %s335, 4
          %s337 = smul.addr %s336, 8
          %s338 = scalar_lea.vmem %s0, %s337
        $region60: #{net_forward.1} parent=55 // pred_fallthru
          _
      $region56: #{net_forward.1} parent=5 // pred_fallthru
        _
      %p339 = scmp.le.s32.totalorder 1, %s20
      %p340 = scmp.lt.s32.totalorder %s20, 3
      %p341 = pnand %p339, %p340
      %p342 = pneg %p341
      // Predicated region
      $region61: #{net_forward.1} parent=5 // pred_check
        _
      $region62: #{net_forward.1} parent=5 // pred_check_branch
        %344 = sbr.rel (%p341) target = $region64
      $region63: #{net_forward.1} parent=5 // pred_region
        %s345 = ssub.s32 %s20, 1
        %p346 = scmp.lt.s32.totalorder %s25, 1
        %s347 = scalar_select %p346, %s25, 1
        %s348 = smul.addr %s347, 4
        %s349 = smul.addr %s348, 8
        %s350 = scalar_lea.vmem %s0, %s349
        %p351 = pneg %p46
        %p352 = pneg %p43
        %p353 = pneg %p67
        %p354 = pneg %p64
        %p355 = pneg %p88
        %p356 = pneg %p85
        %p357 = pneg %p109
        %p358 = pneg %p106
        %p359 = pneg %p130
        %p360 = pneg %p127
        %p361 = pneg %p151
        %p362 = pneg %p148
        %p363 = pneg %p172
        %p364 = pneg %p169
        %p365 = pneg %p193
        %p366 = pneg %p190
        %p367 = pneg %p214
        %p368 = pneg %p211
        %p369 = pneg %p235
        %p370 = pneg %p232
        %p371 = pneg %p256
        %p372 = pneg %p253
        %p373 = pneg %p282
        %p374 = pneg %p279
        %s375 = sand.u32 %s269, 1
        %s376 = scalar_lea.sflag [#allocation4], %s375
        %s377 = sand.u32 %s269, 1
        %s378 = scalar_lea.vmem [#allocation3], %s377
        %p379 = scmp.lt.s32.totalorder %s25, 1
        %s380 = scalar_select %p379, %s25, 1
        %s381 = smul.addr %s380, 4
        %s382 = smul.addr %s381, 8
        %s383 = scalar_lea.vmem %s0, %s382
        %v384 = vld [vmem:[%s383] sm:$0xff]
        %v385 = vld [vmem:[%s383 + $0x8] sm:$0xff]
        %v386 = vld [vmem:[%s383 + $0x10] sm:$0xff]
        %v387 = vld [vmem:[%s383 + $0x18] sm:$0xff]
        %v388 = vld [vmem:[%s1] sm:$0xff]
        %v389 = vld [vmem:[%s1 + $0x8] sm:$0xff]
        %v390 = vld [vmem:[%s1 + $0x10] sm:$0xff]
        %v391 = vld [vmem:[%s1 + $0x18] sm:$0xff]
        %v392 = vld [vmem:[%s1 + $0x20] sm:$0xff]
        %v393 = vld [vmem:[%s1 + $0x28] sm:$0xff]
        %v394 = vld [vmem:[%s1 + $0x30] sm:$0xff]
        %v395 = vld [vmem:[%s1 + $0x38] sm:$0xff]
        %s396 = scalar_lea.vmem %s1, 64
        %v397 = vld [vmem:[%s396] sm:$0xff]
        %v398 = vld [vmem:[%s396 + $0x8] sm:$0xff]
        %v399 = vld [vmem:[%s396 + $0x10] sm:$0xff]
        %v400 = vld [vmem:[%s396 + $0x18] sm:$0xff]
        %v401 = vld [vmem:[%s396 + $0x20] sm:$0xff]
        %v402 = vld [vmem:[%s396 + $0x28] sm:$0xff]
        %v403 = vld [vmem:[%s396 + $0x30] sm:$0xff]
        %v404 = vld [vmem:[%s396 + $0x38] sm:$0xff]
        %vm409 = vcmask 1046528
        %v410 = vrot.slane %v384, 1
        %v411 = vrot.slane %v385, 1
        %v412 = vsel %vm409, %v410, %v411
        %v413 = vrot.slane %v386, 1
        %v414 = vsel %vm409, %v411, %v413
        %v415 = vrot.slane %v387, 1
        %v416 = vsel %vm409, %v413, %v415
        %vm417 = vcmask 261120
        %v418 = vsel %vm417, %v412, 0
        %v420 = vsel %vm417, %v414, 0
        %v422 = vsel %vm417, %v416, 0
        %v424 = vsel %vm417, %v415, 0
        %426 = vmatpush.msra.mxu0 0.0
        %427 = vmatpush.msra.mxu0 0.0
        %428 = vmatpush.msra.mxu0 0.0
        %429 = vmatpush.msra.mxu0 0.0
        %430 = vmatpush.msra.mxu0 0.0
        %431 = vmatpush.msra.mxu0 0.0
        %432 = vmatpush.msra.mxu0 0.0
        %433 = vmatpush.msra.mxu0 0.0
        %434 = vmatpush.msra.mxu0 0.0
        %435 = vmatpush.msra.mxu0 0.0
        %436 = vmatpush.msra.mxu0 0.0
        %437 = vmatpush.msra.mxu0 0.0
        %438 = vmatpush.msra.mxu0 %v403
        %439 = vmatpush.msra.mxu0 %v401
        %440 = vmatpush.msra.mxu0 %v399
        %441 = vmatpush.msra.mxu0 %v397
        %442 = vmatmul.f32.gmra.mxu0 %v418
        %v443 = vpop.f32.mrf.mxu0
        %v444 = vadd.f32 0.0, %v443
        %445 = vmatmul.f32.gmra.mxu0 %v420
        %v446 = vpop.f32.mrf.mxu0
        %v447 = vadd.f32 0.0, %v446
        %448 = vmatmul.f32.gmra.mxu0 %v422
        %v449 = vpop.f32.mrf.mxu0
        %v450 = vadd.f32 0.0, %v449
        %451 = vmatmul.f32.gmra.mxu0 %v424
        %v452 = vpop.f32.mrf.mxu0
        %v453 = vadd.f32 0.0, %v452
        %454 = vdwg.mxu0
        %455 = vmatpush.msra.mxu0 0.0
        %456 = vmatpush.msra.mxu0 0.0
        %457 = vmatpush.msra.mxu0 0.0
        %458 = vmatpush.msra.mxu0 0.0
        %459 = vmatpush.msra.mxu0 0.0
        %460 = vmatpush.msra.mxu0 0.0
        %461 = vmatpush.msra.mxu0 0.0
        %462 = vmatpush.msra.mxu0 0.0
        %463 = vmatpush.msra.mxu0 0.0
        %464 = vmatpush.msra.mxu0 0.0
        %465 = vmatpush.msra.mxu0 0.0
        %466 = vmatpush.msra.mxu0 0.0
        %467 = vmatpush.msra.mxu0 %v404
        %468 = vmatpush.msra.mxu0 %v402
        %469 = vmatpush.msra.mxu0 %v400
        %470 = vmatpush.msra.mxu0 %v398
        %471 = vmatmul.f32.gmra.mxu0 %v418
        %v472 = vpop.f32.mrf.mxu0
        %v473 = vadd.f32 0.0, %v472
        %474 = vmatmul.f32.gmra.mxu0 %v420
        %v475 = vpop.f32.mrf.mxu0
        %v476 = vadd.f32 0.0, %v475
        %477 = vmatmul.f32.gmra.mxu0 %v422
        %v478 = vpop.f32.mrf.mxu0
        %v479 = vadd.f32 0.0, %v478
        %480 = vmatmul.f32.gmra.mxu0 %v424
        %v481 = vpop.f32.mrf.mxu0
        %v482 = vadd.f32 0.0, %v481
        %483 = vdwg.mxu0
        %v484 = vsel %vm417, %v384, 0
        %v486 = vsel %vm417, %v385, 0
        %v488 = vsel %vm417, %v386, 0
        %v490 = vsel %vm417, %v387, 0
        %492 = vmatpush.msra.mxu0 0.0
        %493 = vmatpush.msra.mxu0 0.0
        %494 = vmatpush.msra.mxu0 0.0
        %495 = vmatpush.msra.mxu0 0.0
        %496 = vmatpush.msra.mxu0 0.0
        %497 = vmatpush.msra.mxu0 0.0
        %498 = vmatpush.msra.mxu0 0.0
        %499 = vmatpush.msra.mxu0 0.0
        %500 = vmatpush.msra.mxu0 0.0
        %501 = vmatpush.msra.mxu0 0.0
        %502 = vmatpush.msra.mxu0 0.0
        %503 = vmatpush.msra.mxu0 0.0
        %504 = vmatpush.msra.mxu0 %v394
        %505 = vmatpush.msra.mxu0 %v392
        %506 = vmatpush.msra.mxu0 %v390
        %507 = vmatpush.msra.mxu0 %v388
        %508 = vmatmul.f32.gmra.mxu0 %v484
        %v509 = vpop.f32.mrf.mxu0
        %v510 = vadd.f32 %v444, %v509
        %511 = vmatmul.f32.gmra.mxu0 %v486
        %v512 = vpop.f32.mrf.mxu0
        %v513 = vadd.f32 %v447, %v512
        %514 = vmatmul.f32.gmra.mxu0 %v488
        %v515 = vpop.f32.mrf.mxu0
        %v516 = vadd.f32 %v450, %v515
        %517 = vmatmul.f32.gmra.mxu0 %v490
        %v518 = vpop.f32.mrf.mxu0
        %v519 = vadd.f32 %v453, %v518
        %520 = vdwg.mxu0
        %521 = vmatpush.msra.mxu0 0.0
        %522 = vmatpush.msra.mxu0 0.0
        %523 = vmatpush.msra.mxu0 0.0
        %524 = vmatpush.msra.mxu0 0.0
        %525 = vmatpush.msra.mxu0 0.0
        %526 = vmatpush.msra.mxu0 0.0
        %527 = vmatpush.msra.mxu0 0.0
        %528 = vmatpush.msra.mxu0 0.0
        %529 = vmatpush.msra.mxu0 0.0
        %530 = vmatpush.msra.mxu0 0.0
        %531 = vmatpush.msra.mxu0 0.0
        %532 = vmatpush.msra.mxu0 0.0
        %533 = vmatpush.msra.mxu0 %v395
        %534 = vmatpush.msra.mxu0 %v393
        %535 = vmatpush.msra.mxu0 %v391
        %536 = vmatpush.msra.mxu0 %v389
        %537 = vmatmul.f32.gmra.mxu0 %v484
        %v538 = vpop.f32.mrf.mxu0
        %v539 = vadd.f32 %v473, %v538
        %540 = vmatmul.f32.gmra.mxu0 %v486
        %v541 = vpop.f32.mrf.mxu0
        %v542 = vadd.f32 %v476, %v541
        %543 = vmatmul.f32.gmra.mxu0 %v488
        %v544 = vpop.f32.mrf.mxu0
        %v545 = vadd.f32 %v479, %v544
        %546 = vmatmul.f32.gmra.mxu0 %v490
        %v547 = vpop.f32.mrf.mxu0
        %v548 = vadd.f32 %v482, %v547
        %549 = vdwg.mxu0
        %s550 = scalar_lea.vmem %s1, 128
        %v551 = vld [vmem:[%s550] sm:$0xff]
        %v552 = vld [vmem:[%s550 + $0x8] sm:$0xff]
        %v553 = vld [vmem:[%s550 + $0x10] sm:$0xff]
        %v554 = vld [vmem:[%s550 + $0x18] sm:$0xff]
        %v555 = vld [vmem:[%s550 + $0x20] sm:$0xff]
        %v556 = vld [vmem:[%s550 + $0x28] sm:$0xff]
        %v557 = vld [vmem:[%s550 + $0x30] sm:$0xff]
        %v558 = vld [vmem:[%s550 + $0x38] sm:$0xff]
        %vm559 = vcmask 1045504
        %v560 = vrot.slane %v384, 2
        %v561 = vrot.slane %v385, 2
        %v562 = vsel %vm559, %v560, %v561
        %v563 = vrot.slane %v386, 2
        %v564 = vsel %vm559, %v561, %v563
        %v565 = vrot.slane %v387, 2
        %v566 = vsel %vm559, %v563, %v565
        %v567 = vsel %vm417, %v562, 0
        %v569 = vsel %vm417, %v564, 0
        %v571 = vsel %vm417, %v566, 0
        %v573 = vsel %vm417, %v565, 0
        %575 = vmatpush.msra.mxu0 0.0
        %576 = vmatpush.msra.mxu0 0.0
        %577 = vmatpush.msra.mxu0 0.0
        %578 = vmatpush.msra.mxu0 0.0
        %579 = vmatpush.msra.mxu0 0.0
        %580 = vmatpush.msra.mxu0 0.0
        %581 = vmatpush.msra.mxu0 0.0
        %582 = vmatpush.msra.mxu0 0.0
        %583 = vmatpush.msra.mxu0 0.0
        %584 = vmatpush.msra.mxu0 0.0
        %585 = vmatpush.msra.mxu0 0.0
        %586 = vmatpush.msra.mxu0 0.0
        %587 = vmatpush.msra.mxu0 %v557
        %588 = vmatpush.msra.mxu0 %v555
        %589 = vmatpush.msra.mxu0 %v553
        %590 = vmatpush.msra.mxu0 %v551
        %591 = vmatmul.f32.gmra.mxu0 %v567
        %v592 = vpop.f32.mrf.mxu0
        %v593 = vadd.f32 0.0, %v592
        %594 = vmatmul.f32.gmra.mxu0 %v569
        %v595 = vpop.f32.mrf.mxu0
        %v596 = vadd.f32 0.0, %v595
        %597 = vmatmul.f32.gmra.mxu0 %v571
        %v598 = vpop.f32.mrf.mxu0
        %v599 = vadd.f32 0.0, %v598
        %600 = vmatmul.f32.gmra.mxu0 %v573
        %v601 = vpop.f32.mrf.mxu0
        %v602 = vadd.f32 0.0, %v601
        %603 = vdwg.mxu0
        %604 = vmatpush.msra.mxu0 0.0
        %605 = vmatpush.msra.mxu0 0.0
        %606 = vmatpush.msra.mxu0 0.0
        %607 = vmatpush.msra.mxu0 0.0
        %608 = vmatpush.msra.mxu0 0.0
        %609 = vmatpush.msra.mxu0 0.0
        %610 = vmatpush.msra.mxu0 0.0
        %611 = vmatpush.msra.mxu0 0.0
        %612 = vmatpush.msra.mxu0 0.0
        %613 = vmatpush.msra.mxu0 0.0
        %614 = vmatpush.msra.mxu0 0.0
        %615 = vmatpush.msra.mxu0 0.0
        %616 = vmatpush.msra.mxu0 %v558
        %617 = vmatpush.msra.mxu0 %v556
        %618 = vmatpush.msra.mxu0 %v554
        %619 = vmatpush.msra.mxu0 %v552
        %620 = vmatmul.f32.gmra.mxu0 %v567
        %v621 = vpop.f32.mrf.mxu0
        %v622 = vadd.f32 0.0, %v621
        %623 = vmatmul.f32.gmra.mxu0 %v569
        %v624 = vpop.f32.mrf.mxu0
        %v625 = vadd.f32 0.0, %v624
        %626 = vmatmul.f32.gmra.mxu0 %v571
        %v627 = vpop.f32.mrf.mxu0
        %v628 = vadd.f32 0.0, %v627
        %629 = vmatmul.f32.gmra.mxu0 %v573
        %v630 = vpop.f32.mrf.mxu0
        %v631 = vadd.f32 0.0, %v630
        %632 = vdwg.mxu0
        %v633 = vadd.f32 %v510, %v593
        %v634 = vadd.f32 %v539, %v622
        %v635 = vadd.f32 %v513, %v596
        %v636 = vadd.f32 %v542, %v625
        %v637 = vadd.f32 %v516, %v599
        %v638 = vadd.f32 %v545, %v628
        %v639 = vadd.f32 %v519, %v602
        %v640 = vadd.f32 %v548, %v631
        %s641 = scalar_lea.vmem %s1, 192
        %v642 = vld [vmem:[%s641] sm:$0xff]
        %v643 = vld [vmem:[%s641 + $0x8] sm:$0xff]
        %v644 = vld [vmem:[%s641 + $0x10] sm:$0xff]
        %v645 = vld [vmem:[%s641 + $0x18] sm:$0xff]
        %v646 = vld [vmem:[%s641 + $0x20] sm:$0xff]
        %v647 = vld [vmem:[%s641 + $0x28] sm:$0xff]
        %v648 = vld [vmem:[%s641 + $0x30] sm:$0xff]
        %v649 = vld [vmem:[%s641 + $0x38] sm:$0xff]
        %vm650 = vcmask 1044480
        %v651 = vrot.slane %v384, 3
        %v652 = vrot.slane %v385, 3
        %v653 = vsel %vm650, %v651, %v652
        %v654 = vrot.slane %v386, 3
        %v655 = vsel %vm650, %v652, %v654
        %v656 = vrot.slane %v387, 3
        %v657 = vsel %vm650, %v654, %v656
        %v658 = vsel %vm417, %v653, 0
        %v660 = vsel %vm417, %v655, 0
        %v662 = vsel %vm417, %v657, 0
        %v664 = vsel %vm417, %v656, 0
        %666 = vmatpush.msra.mxu0 0.0
        %667 = vmatpush.msra.mxu0 0.0
        %668 = vmatpush.msra.mxu0 0.0
        %669 = vmatpush.msra.mxu0 0.0
        %670 = vmatpush.msra.mxu0 0.0
        %671 = vmatpush.msra.mxu0 0.0
        %672 = vmatpush.msra.mxu0 0.0
        %673 = vmatpush.msra.mxu0 0.0
        %674 = vmatpush.msra.mxu0 0.0
        %675 = vmatpush.msra.mxu0 0.0
        %676 = vmatpush.msra.mxu0 0.0
        %677 = vmatpush.msra.mxu0 0.0
        %678 = vmatpush.msra.mxu0 %v648
        %679 = vmatpush.msra.mxu0 %v646
        %680 = vmatpush.msra.mxu0 %v644
        %681 = vmatpush.msra.mxu0 %v642
        %682 = vmatmul.f32.gmra.mxu0 %v658
        %v683 = vpop.f32.mrf.mxu0
        %v684 = vadd.f32 0.0, %v683
        %685 = vmatmul.f32.gmra.mxu0 %v660
        %v686 = vpop.f32.mrf.mxu0
        %v687 = vadd.f32 0.0, %v686
        %688 = vmatmul.f32.gmra.mxu0 %v662
        %v689 = vpop.f32.mrf.mxu0
        %v690 = vadd.f32 0.0, %v689
        %691 = vmatmul.f32.gmra.mxu0 %v664
        %v692 = vpop.f32.mrf.mxu0
        %v693 = vadd.f32 0.0, %v692
        %694 = vdwg.mxu0
        %695 = vmatpush.msra.mxu0 0.0
        %696 = vmatpush.msra.mxu0 0.0
        %697 = vmatpush.msra.mxu0 0.0
        %698 = vmatpush.msra.mxu0 0.0
        %699 = vmatpush.msra.mxu0 0.0
        %700 = vmatpush.msra.mxu0 0.0
        %701 = vmatpush.msra.mxu0 0.0
        %702 = vmatpush.msra.mxu0 0.0
        %703 = vmatpush.msra.mxu0 0.0
        %704 = vmatpush.msra.mxu0 0.0
        %705 = vmatpush.msra.mxu0 0.0
        %706 = vmatpush.msra.mxu0 0.0
        %707 = vmatpush.msra.mxu0 %v649
        %708 = vmatpush.msra.mxu0 %v647
        %709 = vmatpush.msra.mxu0 %v645
        %710 = vmatpush.msra.mxu0 %v643
        %711 = vmatmul.f32.gmra.mxu0 %v658
        %v712 = vpop.f32.mrf.mxu0
        %v713 = vadd.f32 0.0, %v712
        %714 = vmatmul.f32.gmra.mxu0 %v660
        %v715 = vpop.f32.mrf.mxu0
        %v716 = vadd.f32 0.0, %v715
        %717 = vmatmul.f32.gmra.mxu0 %v662
        %v718 = vpop.f32.mrf.mxu0
        %v719 = vadd.f32 0.0, %v718
        %720 = vmatmul.f32.gmra.mxu0 %v664
        %v721 = vpop.f32.mrf.mxu0
        %v722 = vadd.f32 0.0, %v721
        %723 = vdwg.mxu0
        %v724 = vadd.f32 %v633, %v684
        %v725 = vadd.f32 %v634, %v713
        %v726 = vadd.f32 %v635, %v687
        %v727 = vadd.f32 %v636, %v716
        %v728 = vadd.f32 %v637, %v690
        %v729 = vadd.f32 %v638, %v719
        %v730 = vadd.f32 %v639, %v693
        %v731 = vadd.f32 %v640, %v722
        %s732 = scalar_lea.vmem %s1, 256
        %v733 = vld [vmem:[%s732] sm:$0xff]
        %v734 = vld [vmem:[%s732 + $0x8] sm:$0xff]
        %v735 = vld [vmem:[%s732 + $0x10] sm:$0xff]
        %v736 = vld [vmem:[%s732 + $0x18] sm:$0xff]
        %v737 = vld [vmem:[%s732 + $0x20] sm:$0xff]
        %v738 = vld [vmem:[%s732 + $0x28] sm:$0xff]
        %v739 = vld [vmem:[%s732 + $0x30] sm:$0xff]
        %v740 = vld [vmem:[%s732 + $0x38] sm:$0xff]
        %vm741 = vcmask 1043456
        %v742 = vrot.slane %v384, 4
        %v743 = vrot.slane %v385, 4
        %v744 = vsel %vm741, %v742, %v743
        %v745 = vrot.slane %v386, 4
        %v746 = vsel %vm741, %v743, %v745
        %v747 = vrot.slane %v387, 4
        %v748 = vsel %vm741, %v745, %v747
        %v749 = vsel %vm417, %v744, 0
        %v751 = vsel %vm417, %v746, 0
        %v753 = vsel %vm417, %v748, 0
        %v755 = vsel %vm417, %v747, 0
        %757 = vmatpush.msra.mxu0 0.0
        %758 = vmatpush.msra.mxu0 0.0
        %759 = vmatpush.msra.mxu0 0.0
        %760 = vmatpush.msra.mxu0 0.0
        %761 = vmatpush.msra.mxu0 0.0
        %762 = vmatpush.msra.mxu0 0.0
        %763 = vmatpush.msra.mxu0 0.0
        %764 = vmatpush.msra.mxu0 0.0
        %765 = vmatpush.msra.mxu0 0.0
        %766 = vmatpush.msra.mxu0 0.0
        %767 = vmatpush.msra.mxu0 0.0
        %768 = vmatpush.msra.mxu0 0.0
        %769 = vmatpush.msra.mxu0 %v739
        %770 = vmatpush.msra.mxu0 %v737
        %771 = vmatpush.msra.mxu0 %v735
        %772 = vmatpush.msra.mxu0 %v733
        %773 = vmatmul.f32.gmra.mxu0 %v749
        %v774 = vpop.f32.mrf.mxu0
        %v775 = vadd.f32 0.0, %v774
        %776 = vmatmul.f32.gmra.mxu0 %v751
        %v777 = vpop.f32.mrf.mxu0
        %v778 = vadd.f32 0.0, %v777
        %779 = vmatmul.f32.gmra.mxu0 %v753
        %v780 = vpop.f32.mrf.mxu0
        %v781 = vadd.f32 0.0, %v780
        %782 = vmatmul.f32.gmra.mxu0 %v755
        %v783 = vpop.f32.mrf.mxu0
        %v784 = vadd.f32 0.0, %v783
        %785 = vdwg.mxu0
        %786 = vmatpush.msra.mxu0 0.0
        %787 = vmatpush.msra.mxu0 0.0
        %788 = vmatpush.msra.mxu0 0.0
        %789 = vmatpush.msra.mxu0 0.0
        %790 = vmatpush.msra.mxu0 0.0
        %791 = vmatpush.msra.mxu0 0.0
        %792 = vmatpush.msra.mxu0 0.0
        %793 = vmatpush.msra.mxu0 0.0
        %794 = vmatpush.msra.mxu0 0.0
        %795 = vmatpush.msra.mxu0 0.0
        %796 = vmatpush.msra.mxu0 0.0
        %797 = vmatpush.msra.mxu0 0.0
        %798 = vmatpush.msra.mxu0 %v740
        %799 = vmatpush.msra.mxu0 %v738
        %800 = vmatpush.msra.mxu0 %v736
        %801 = vmatpush.msra.mxu0 %v734
        %802 = vmatmul.f32.gmra.mxu0 %v749
        %v803 = vpop.f32.mrf.mxu0
        %v804 = vadd.f32 0.0, %v803
        %805 = vmatmul.f32.gmra.mxu0 %v751
        %v806 = vpop.f32.mrf.mxu0
        %v807 = vadd.f32 0.0, %v806
        %808 = vmatmul.f32.gmra.mxu0 %v753
        %v809 = vpop.f32.mrf.mxu0
        %v810 = vadd.f32 0.0, %v809
        %811 = vmatmul.f32.gmra.mxu0 %v755
        %v812 = vpop.f32.mrf.mxu0
        %v813 = vadd.f32 0.0, %v812
        %814 = vdwg.mxu0
        %v815 = vadd.f32 %v724, %v775
        %v816 = vadd.f32 %v725, %v804
        %v817 = vadd.f32 %v726, %v778
        %v818 = vadd.f32 %v727, %v807
        %v819 = vadd.f32 %v728, %v781
        %v820 = vadd.f32 %v729, %v810
        %v821 = vadd.f32 %v730, %v784
        %v822 = vadd.f32 %v731, %v813
        %v823 = vld [vmem:[%s2] sm:$0x3]
        %v825 = vperm.slane %v823, 0
        %v826 = vperm.slane %v823, 1
        %v829 = vadd.f32 %v815, %v825
        %v830 = vadd.f32 %v816, %v826
        %v831 = vadd.f32 %v817, %v825
        %v832 = vadd.f32 %v818, %v826
        %v833 = vadd.f32 %v819, %v825
        %v834 = vadd.f32 %v820, %v826
        %v835 = vadd.f32 %v821, %v825
        %v836 = vadd.f32 %v822, %v826
        %v837 = vmax.f32 %v829, 0.0
        %v838 = vmax.f32 %v830, 0.0
        %v839 = vmax.f32 %v831, 0.0
        %v840 = vmax.f32 %v832, 0.0
        %v841 = vmax.f32 %v833, 0.0
        %v842 = vmax.f32 %v834, 0.0
        %v843 = vmax.f32 %v835, 0.0
        %v844 = vmax.f32 %v836, 0.0
        %853 = vrot.lane.b32.xlu0 %v837, 122
        %v854 = vpop.permute.xlu0 %853
        %855 = vrot.lane.b32.xlu0 %v838, 122
        %v856 = vpop.permute.xlu0 %855
        %857 = vrot.lane.b32.xlu0 %v839, 122
        %v858 = vpop.permute.xlu0 %857
        %859 = vrot.lane.b32.xlu0 %v840, 122
        %v860 = vpop.permute.xlu0 %859
        %861 = vrot.lane.b32.xlu0 %v841, 122
        %v862 = vpop.permute.xlu0 %861
        %863 = vrot.lane.b32.xlu0 %v842, 122
        %v864 = vpop.permute.xlu0 %863
        %865 = vrot.lane.b32.xlu0 %v843, 122
        %v866 = vpop.permute.xlu0 %865
        %867 = vrot.lane.b32.xlu0 %v844, 122
        %v868 = vpop.permute.xlu0 %867
        %vm869 = vcmask 998400
        %v870 = vsel %vm869, %v854, %v856
        %v871 = vsel %vm869, %v858, %v860
        %v872 = vsel %vm869, %v862, %v864
        %v873 = vsel %vm869, %v866, %v868
        %v882 = vmax.f32 %v837, %v870
        %v883 = vmax.f32 %v838, %v856
        %v884 = vmax.f32 %v839, %v871
        %v885 = vmax.f32 %v840, %v860
        %v886 = vmax.f32 %v841, %v872
        %v887 = vmax.f32 %v842, %v864
        %v888 = vmax.f32 %v843, %v873
        %v889 = vmax.f32 %v844, %v868
        %v892 = vrot.slane %v882, 1
        %v893 = vrot.slane %v883, 1
        %v896 = vmax.f32 %v882, %v892
        %v897 = vmax.f32 %v883, %v893
        %v900 = vrot.slane %v897, 7
        %vm901 = vcmask 1040384
        %v902 = vsel %vm901, %v896, %v900
        %v904 = vlaneseq
        %vm905 = vcmp.ge.s32.totalorder %v904, 0
        %vm906 = vcmp.lt.s32.totalorder %v904, 162
        %vm907 = vmand %vm905, %vm906
        %908 = vst.msk [vmem:[#allocation2] ss:$8 sm:$0x3] %vm907, %v902
        %909 = vst.msk [vmem:[#allocation2] ss:$8 sm:$0x0] %vm907, %v902
        %910 = vst [vmem:[#allocation1] sm:$0xff] %v896
        %911 = vst [vmem:[#allocation1 + $0x9] sm:$0xff] %v897
        %s912 = scalar_lea.vmem [#allocation1], 2
        %v913 = vld [vmem:[%s912] ss:$9 sm:$0xff]
        %s915 = scalar_lea.vmem [#allocation2], 1
        %916 = vst.msk [vmem:[%s915] ss:$8 sm:$0x3] %vm907, %v913
        %917 = vst.msk [vmem:[%s915] ss:$8 sm:$0x0] %vm907, %v913
        %918 = vst [vmem:[#allocation1] sm:$0xff] %v896
        %919 = vst [vmem:[#allocation1 + $0x9] sm:$0xff] %v897
        %s920 = scalar_lea.vmem [#allocation1], 4
        %v921 = vld [vmem:[%s920] ss:$9 sm:$0xff]
        %s923 = scalar_lea.vmem [#allocation2], 2
        %924 = vst.msk [vmem:[%s923] ss:$8 sm:$0x3] %vm907, %v921
        %925 = vst.msk [vmem:[%s923] ss:$8 sm:$0x0] %vm907, %v921
        %926 = vst [vmem:[#allocation1] sm:$0xff] %v896
        %927 = vst [vmem:[#allocation1 + $0x9] sm:$0xff] %v897
        %s928 = scalar_lea.vmem [#allocation1], 6
        %v929 = vld [vmem:[%s928] ss:$9 sm:$0xff]
        %s931 = scalar_lea.vmem [#allocation2], 3
        %932 = vst.msk [vmem:[%s931] ss:$8 sm:$0x3] %vm907, %v929
        %933 = vst.msk [vmem:[%s931] ss:$8 sm:$0x0] %vm907, %v929
        %v936 = vrot.slane %v884, 1
        %v937 = vrot.slane %v885, 1
        %v940 = vmax.f32 %v884, %v936
        %v941 = vmax.f32 %v885, %v937
        %v944 = vrot.slane %v941, 7
        %v945 = vsel %vm901, %v940, %v944
        %s947 = scalar_lea.vmem [#allocation2], 4
        %948 = vst.msk [vmem:[%s947] ss:$8 sm:$0x3] %vm907, %v945
        %949 = vst.msk [vmem:[%s947] ss:$8 sm:$0x0] %vm907, %v945
        %950 = vst [vmem:[#allocation1] sm:$0xff] %v940
        %951 = vst [vmem:[#allocation1 + $0x9] sm:$0xff] %v941
        %s952 = scalar_lea.vmem [#allocation1], 2
        %v953 = vld [vmem:[%s952] ss:$9 sm:$0xff]
        %s955 = scalar_lea.vmem [#allocation2], 5
        %956 = vst.msk [vmem:[%s955] ss:$8 sm:$0x3] %vm907, %v953
        %957 = vst.msk [vmem:[%s955] ss:$8 sm:$0x0] %vm907, %v953
        %958 = vst [vmem:[#allocation1] sm:$0xff] %v940
        %959 = vst [vmem:[#allocation1 + $0x9] sm:$0xff] %v941
        %s960 = scalar_lea.vmem [#allocation1], 4
        %v961 = vld [vmem:[%s960] ss:$9 sm:$0xff]
        %s963 = scalar_lea.vmem [#allocation2], 6
        %964 = vst.msk [vmem:[%s963] ss:$8 sm:$0x3] %vm907, %v961
        %965 = vst.msk [vmem:[%s963] ss:$8 sm:$0x0] %vm907, %v961
        %966 = vst [vmem:[#allocation1] sm:$0xff] %v940
        %967 = vst [vmem:[#allocation1 + $0x9] sm:$0xff] %v941
        %s968 = scalar_lea.vmem [#allocation1], 6
        %v969 = vld [vmem:[%s968] ss:$9 sm:$0xff]
        %s971 = scalar_lea.vmem [#allocation2], 7
        %972 = vst.msk [vmem:[%s971] ss:$8 sm:$0x3] %vm907, %v969
        %973 = vst.msk [vmem:[%s971] ss:$8 sm:$0x0] %vm907, %v969
        %v976 = vrot.slane %v886, 1
        %v977 = vrot.slane %v887, 1
        %v980 = vmax.f32 %v886, %v976
        %v981 = vmax.f32 %v887, %v977
        %v984 = vrot.slane %v981, 7
        %v985 = vsel %vm901, %v980, %v984
        %s987 = scalar_lea.vmem [#allocation2], 16
        %988 = vst.msk [vmem:[%s987] ss:$8 sm:$0x3] %vm907, %v985
        %989 = vst.msk [vmem:[%s987] ss:$8 sm:$0x0] %vm907, %v985
        %990 = vst [vmem:[#allocation1] sm:$0xff] %v980
        %991 = vst [vmem:[#allocation1 + $0x9] sm:$0xff] %v981
        %s992 = scalar_lea.vmem [#allocation1], 2
        %v993 = vld [vmem:[%s992] ss:$9 sm:$0xff]
        %s995 = scalar_lea.vmem [#allocation2], 17
        %996 = vst.msk [vmem:[%s995] ss:$8 sm:$0x3] %vm907, %v993
        %997 = vst.msk [vmem:[%s995] ss:$8 sm:$0x0] %vm907, %v993
        %998 = vst [vmem:[#allocation1] sm:$0xff] %v980
        %999 = vst [vmem:[#allocation1 + $0x9] sm:$0xff] %v981
        %s1000 = scalar_lea.vmem [#allocation1], 4
        %v1001 = vld [vmem:[%s1000] ss:$9 sm:$0xff]
        %s1003 = scalar_lea.vmem [#allocation2], 18
        %1004 = vst.msk [vmem:[%s1003] ss:$8 sm:$0x3] %vm907, %v1001
        %1005 = vst.msk [vmem:[%s1003] ss:$8 sm:$0x0] %vm907, %v1001
        %1006 = vst [vmem:[#allocation1] sm:$0xff] %v980
        %1007 = vst [vmem:[#allocation1 + $0x9] sm:$0xff] %v981
        %s1008 = scalar_lea.vmem [#allocation1], 6
        %v1009 = vld [vmem:[%s1008] ss:$9 sm:$0xff]
        %s1011 = scalar_lea.vmem [#allocation2], 19
        %1012 = vst.msk [vmem:[%s1011] ss:$8 sm:$0x3] %vm907, %v1009
        %1013 = vst.msk [vmem:[%s1011] ss:$8 sm:$0x0] %vm907, %v1009
        %v1016 = vrot.slane %v888, 1
        %v1017 = vrot.slane %v889, 1
        %v1020 = vmax.f32 %v888, %v1016
        %v1021 = vmax.f32 %v889, %v1017
        %v1024 = vrot.slane %v1021, 7
        %v1025 = vsel %vm901, %v1020, %v1024
        %s1027 = scalar_lea.vmem [#allocation2], 20
        %1028 = vst.msk [vmem:[%s1027] ss:$8 sm:$0x3] %vm907, %v1025
        %1029 = vst.msk [vmem:[%s1027] ss:$8 sm:$0x0] %vm907, %v1025
        %1030 = vst [vmem:[#allocation1] sm:$0xff] %v1020
        %1031 = vst [vmem:[#allocation1 + $0x9] sm:$0xff] %v1021
        %s1032 = scalar_lea.vmem [#allocation1], 2
        %v1033 = vld [vmem:[%s1032] ss:$9 sm:$0xff]
        %s1035 = scalar_lea.vmem [#allocation2], 21
        %1036 = vst.msk [vmem:[%s1035] ss:$8 sm:$0x3] %vm907, %v1033
        %1037 = vst.msk [vmem:[%s1035] ss:$8 sm:$0x0] %vm907, %v1033
        %v1038 = vld [vmem:[#allocation2] sm:$0xff]
        %v1039 = vld [vmem:[#allocation2 + $0x8] sm:$0xff]
        %v1040 = vld [vmem:[#allocation2 + $0x10] sm:$0x3]
        %v1041 = vld [vmem:[#allocation2 + $0x18] sm:$0x3]
        %v1042 = vld [vmem:[%s3] sm:$0xff]
        %v1043 = vld [vmem:[%s3 + $0x8] sm:$0xff]
        %v1044 = vld [vmem:[%s3 + $0x10] sm:$0xff]
        %v1045 = vld [vmem:[%s3 + $0x18] sm:$0xff]
        %v1046 = vld [vmem:[%s3 + $0x20] sm:$0xff]
        %v1047 = vld [vmem:[%s3 + $0x28] sm:$0xff]
        %v1048 = vld [vmem:[%s3 + $0x30] sm:$0xff]
        %v1049 = vld [vmem:[%s3 + $0x38] sm:$0xff]
        %v1050 = vld [vmem:[%s3 + $0x40] sm:$0xff]
        %v1051 = vld [vmem:[%s3 + $0x48] sm:$0xff]
        %v1052 = vld [vmem:[%s3 + $0x50] sm:$0xff]
        %v1053 = vld [vmem:[%s3 + $0x58] sm:$0xff]
        %v1054 = vld [vmem:[%s3 + $0x60] sm:$0xff]
        %v1055 = vld [vmem:[%s3 + $0x68] sm:$0xff]
        %v1056 = vld [vmem:[%s3 + $0x70] sm:$0xff]
        %v1057 = vld [vmem:[%s3 + $0x78] sm:$0xff]
        %v1058 = vld [vmem:[%s3 + $0x80] sm:$0xff]
        %v1059 = vld [vmem:[%s3 + $0x88] sm:$0xff]
        %v1060 = vld [vmem:[%s3 + $0x90] sm:$0xff]
        %v1061 = vld [vmem:[%s3 + $0x98] sm:$0xff]
        %v1062 = vld [vmem:[%s3 + $0xa0] sm:$0xff]
        %v1063 = vld [vmem:[%s3 + $0xa8] sm:$0xff]
        %v1064 = vld [vmem:[%s3 + $0xb0] sm:$0xff]
        %v1065 = vld [vmem:[%s3 + $0xb8] sm:$0xff]
        %v1066 = vld [vmem:[%s3 + $0xc0] sm:$0xff]
        %v1067 = vld [vmem:[%s3 + $0xc8] sm:$0xff]
        %v1068 = vld [vmem:[%s3 + $0xd0] sm:$0xff]
        %v1069 = vld [vmem:[%s3 + $0xd8] sm:$0xff]
        %v1070 = vld [vmem:[%s3 + $0xe0] sm:$0xff]
        %v1071 = vld [vmem:[%s3 + $0xe8] sm:$0xff]
        %v1072 = vld [vmem:[%s3 + $0xf0] sm:$0xff]
        %v1073 = vld [vmem:[%s3 + $0xf8] sm:$0xff]
        %v1074 = vld [vmem:[%s3 + $0x100] sm:$0xff]
        %v1075 = vld [vmem:[%s3 + $0x108] sm:$0xff]
        %v1076 = vld [vmem:[%s3 + $0x110] sm:$0xff]
        %v1077 = vld [vmem:[%s3 + $0x118] sm:$0xff]
        %v1078 = vld [vmem:[%s3 + $0x120] sm:$0xff]
        %v1079 = vld [vmem:[%s3 + $0x128] sm:$0xff]
        %v1080 = vld [vmem:[%s3 + $0x130] sm:$0xff]
        %v1081 = vld [vmem:[%s3 + $0x138] sm:$0xff]
        %v1082 = vld [vmem:[%s3 + $0x140] sm:$0x3]
        %v1083 = vld [vmem:[%s3 + $0x148] sm:$0x3]
        %v1084 = vld [vmem:[#allocation2] sm:$0xfe]
        %v1085 = vld [vmem:[#allocation2 + $0x8] sm:$0xfe]
        %v1086 = vld [vmem:[#allocation2 + $0x10] sm:$0x7]
        %v1087 = vld [vmem:[#allocation2 + $0x18] sm:$0x7]
        %s1088 = scalar_lea.vmem %s3, 336
        %v1089 = vld [vmem:[%s1088] sm:$0xff]
        %v1090 = vld [vmem:[%s1088 + $0x8] sm:$0xff]
        %v1091 = vld [vmem:[%s1088 + $0x10] sm:$0xff]
        %v1092 = vld [vmem:[%s1088 + $0x18] sm:$0xff]
        %v1093 = vld [vmem:[%s1088 + $0x20] sm:$0xff]
        %v1094 = vld [vmem:[%s1088 + $0x28] sm:$0xff]
        %v1095 = vld [vmem:[%s1088 + $0x30] sm:$0xff]
        %v1096 = vld [vmem:[%s1088 + $0x38] sm:$0xff]
        %v1097 = vld [vmem:[%s1088 + $0x40] sm:$0xff]
        %v1098 = vld [vmem:[%s1088 + $0x48] sm:$0xff]
        %v1099 = vld [vmem:[%s1088 + $0x50] sm:$0xff]
        %v1100 = vld [vmem:[%s1088 + $0x58] sm:$0xff]
        %v1101 = vld [vmem:[%s1088 + $0x60] sm:$0xff]
        %v1102 = vld [vmem:[%s1088 + $0x68] sm:$0xff]
        %v1103 = vld [vmem:[%s1088 + $0x70] sm:$0xff]
        %v1104 = vld [vmem:[%s1088 + $0x78] sm:$0xff]
        %v1105 = vld [vmem:[%s1088 + $0x80] sm:$0xff]
        %v1106 = vld [vmem:[%s1088 + $0x88] sm:$0xff]
        %v1107 = vld [vmem:[%s1088 + $0x90] sm:$0xff]
        %v1108 = vld [vmem:[%s1088 + $0x98] sm:$0xff]
        %v1109 = vld [vmem:[%s1088 + $0xa0] sm:$0xff]
        %v1110 = vld [vmem:[%s1088 + $0xa8] sm:$0xff]
        %v1111 = vld [vmem:[%s1088 + $0xb0] sm:$0xff]
        %v1112 = vld [vmem:[%s1088 + $0xb8] sm:$0xff]
        %v1113 = vld [vmem:[%s1088 + $0xc0] sm:$0xff]
        %v1114 = vld [vmem:[%s1088 + $0xc8] sm:$0xff]
        %v1115 = vld [vmem:[%s1088 + $0xd0] sm:$0xff]
        %v1116 = vld [vmem:[%s1088 + $0xd8] sm:$0xff]
        %v1117 = vld [vmem:[%s1088 + $0xe0] sm:$0xff]
        %v1118 = vld [vmem:[%s1088 + $0xe8] sm:$0xff]
        %v1119 = vld [vmem:[%s1088 + $0xf0] sm:$0xff]
        %v1120 = vld [vmem:[%s1088 + $0xf8] sm:$0xff]
        %v1121 = vld [vmem:[%s1088 + $0x100] sm:$0xff]
        %v1122 = vld [vmem:[%s1088 + $0x108] sm:$0xff]
        %v1123 = vld [vmem:[%s1088 + $0x110] sm:$0xff]
        %v1124 = vld [vmem:[%s1088 + $0x118] sm:$0xff]
        %v1125 = vld [vmem:[%s1088 + $0x120] sm:$0xff]
        %v1126 = vld [vmem:[%s1088 + $0x128] sm:$0xff]
        %v1127 = vld [vmem:[%s1088 + $0x130] sm:$0xff]
        %v1128 = vld [vmem:[%s1088 + $0x138] sm:$0xff]
        %v1129 = vld [vmem:[%s1088 + $0x140] sm:$0x3]
        %v1130 = vld [vmem:[%s1088 + $0x148] sm:$0x3]
        %v1135 = vrot.slane %v1084, 1
        %v1136 = vrot.slane %v1086, 1
        %v1137 = vsel %vm409, %v1135, %v1136
        %v1138 = vrot.slane %v1085, 1
        %v1139 = vrot.slane %v1087, 1
        %v1140 = vsel %vm409, %v1138, %v1139
        %vm1143 = vcmask 277504
        %v1144 = vsel %vm1143, %v1140, 0
        %v1146 = vsel %vm1143, %v1139, 0
        %vm1148 = vcmask 1041408
        %v1150 = vsel %vm1148, %v1129, 0
        %v1153 = vsel %vm1148, %v1130, 0
        %1155 = vmatpush.msra.mxu0 %v1119
        %1156 = vmatpush.msra.mxu0 %v1117
        %1157 = vmatpush.msra.mxu0 %v1115
        %1158 = vmatpush.msra.mxu0 %v1113
        %1159 = vmatpush.msra.mxu0 %v1111
        %1160 = vmatpush.msra.mxu0 %v1109
        %1161 = vmatpush.msra.mxu0 %v1107
        %1162 = vmatpush.msra.mxu0 %v1105
        %1163 = vmatpush.msra.mxu0 %v1103
        %1164 = vmatpush.msra.mxu0 %v1101
        %1165 = vmatpush.msra.mxu0 %v1099
        %1166 = vmatpush.msra.mxu0 %v1097
        %1167 = vmatpush.msra.mxu0 %v1095
        %1168 = vmatpush.msra.mxu0 %v1093
        %1169 = vmatpush.msra.mxu0 %v1091
        %1170 = vmatpush.msra.mxu0 %v1089
        %1171 = vmatmul.f32.gmra.mxu0 %v1137
        %v1172 = vpop.f32.mrf.mxu0
        %v1173 = vadd.f32 0.0, %v1172
        %1174 = vmatmul.f32.gmra.mxu0 %v1136
        %v1175 = vpop.f32.mrf.mxu0
        %v1176 = vadd.f32 0.0, %v1175
        %1177 = vdwg.mxu0
        %1178 = vmatpush.msra.mxu0 0.0
        %1179 = vmatpush.msra.mxu0 0.0
        %1180 = vmatpush.msra.mxu0 0.0
        %1181 = vmatpush.msra.mxu0 0.0
        %1182 = vmatpush.msra.mxu0 0.0
        %1183 = vmatpush.msra.mxu0 0.0
        %1184 = vmatpush.msra.mxu0 0.0
        %1185 = vmatpush.msra.mxu0 0.0
        %1186 = vmatpush.msra.mxu0 0.0
        %1187 = vmatpush.msra.mxu0 0.0
        %1188 = vmatpush.msra.mxu0 0.0
        %1189 = vmatpush.msra.mxu0 %v1150
        %1190 = vmatpush.msra.mxu0 %v1127
        %1191 = vmatpush.msra.mxu0 %v1125
        %1192 = vmatpush.msra.mxu0 %v1123
        %1193 = vmatpush.msra.mxu0 %v1121
        %1194 = vmatmul.f32.gmra.mxu0 %v1144
        %v1195 = vpop.f32.mrf.mxu0
        %v1196 = vadd.f32 %v1173, %v1195
        %1197 = vmatmul.f32.gmra.mxu0 %v1146
        %v1198 = vpop.f32.mrf.mxu0
        %v1199 = vadd.f32 %v1176, %v1198
        %1200 = vdwg.mxu0
        %1201 = vmatpush.msra.mxu0 %v1120
        %1202 = vmatpush.msra.mxu0 %v1118
        %1203 = vmatpush.msra.mxu0 %v1116
        %1204 = vmatpush.msra.mxu0 %v1114
        %1205 = vmatpush.msra.mxu0 %v1112
        %1206 = vmatpush.msra.mxu0 %v1110
        %1207 = vmatpush.msra.mxu0 %v1108
        %1208 = vmatpush.msra.mxu0 %v1106
        %1209 = vmatpush.msra.mxu0 %v1104
        %1210 = vmatpush.msra.mxu0 %v1102
        %1211 = vmatpush.msra.mxu0 %v1100
        %1212 = vmatpush.msra.mxu0 %v1098
        %1213 = vmatpush.msra.mxu0 %v1096
        %1214 = vmatpush.msra.mxu0 %v1094
        %1215 = vmatpush.msra.mxu0 %v1092
        %1216 = vmatpush.msra.mxu0 %v1090
        %1217 = vmatmul.f32.gmra.mxu0 %v1137
        %v1218 = vpop.f32.mrf.mxu0
        %v1219 = vadd.f32 0.0, %v1218
        %1220 = vmatmul.f32.gmra.mxu0 %v1136
        %v1221 = vpop.f32.mrf.mxu0
        %v1222 = vadd.f32 0.0, %v1221
        %1223 = vdwg.mxu0
        %1224 = vmatpush.msra.mxu0 0.0
        %1225 = vmatpush.msra.mxu0 0.0
        %1226 = vmatpush.msra.mxu0 0.0
        %1227 = vmatpush.msra.mxu0 0.0
        %1228 = vmatpush.msra.mxu0 0.0
        %1229 = vmatpush.msra.mxu0 0.0
        %1230 = vmatpush.msra.mxu0 0.0
        %1231 = vmatpush.msra.mxu0 0.0
        %1232 = vmatpush.msra.mxu0 0.0
        %1233 = vmatpush.msra.mxu0 0.0
        %1234 = vmatpush.msra.mxu0 0.0
        %1235 = vmatpush.msra.mxu0 %v1153
        %1236 = vmatpush.msra.mxu0 %v1128
        %1237 = vmatpush.msra.mxu0 %v1126
        %1238 = vmatpush.msra.mxu0 %v1124
        %1239 = vmatpush.msra.mxu0 %v1122
        %1240 = vmatmul.f32.gmra.mxu0 %v1144
        %v1241 = vpop.f32.mrf.mxu0
        %v1242 = vadd.f32 %v1219, %v1241
        %1243 = vmatmul.f32.gmra.mxu0 %v1146
        %v1244 = vpop.f32.mrf.mxu0
        %v1245 = vadd.f32 %v1222, %v1244
        %1246 = vdwg.mxu0
        %v1248 = vsel %vm1143, %v1039, 0
        %v1251 = vsel %vm1143, %v1041, 0
        %v1254 = vsel %vm1148, %v1082, 0
        %v1257 = vsel %vm1148, %v1083, 0
        %1259 = vmatpush.msra.mxu0 %v1072
        %1260 = vmatpush.msra.mxu0 %v1070
        %1261 = vmatpush.msra.mxu0 %v1068
        %1262 = vmatpush.msra.mxu0 %v1066
        %1263 = vmatpush.msra.mxu0 %v1064
        %1264 = vmatpush.msra.mxu0 %v1062
        %1265 = vmatpush.msra.mxu0 %v1060
        %1266 = vmatpush.msra.mxu0 %v1058
        %1267 = vmatpush.msra.mxu0 %v1056
        %1268 = vmatpush.msra.mxu0 %v1054
        %1269 = vmatpush.msra.mxu0 %v1052
        %1270 = vmatpush.msra.mxu0 %v1050
        %1271 = vmatpush.msra.mxu0 %v1048
        %1272 = vmatpush.msra.mxu0 %v1046
        %1273 = vmatpush.msra.mxu0 %v1044
        %1274 = vmatpush.msra.mxu0 %v1042
        %1275 = vmatmul.f32.gmra.mxu0 %v1038
        %v1276 = vpop.f32.mrf.mxu0
        %v1277 = vadd.f32 %v1196, %v1276
        %1278 = vmatmul.f32.gmra.mxu0 %v1040
        %v1279 = vpop.f32.mrf.mxu0
        %v1280 = vadd.f32 %v1199, %v1279
        %1281 = vdwg.mxu0
        %1282 = vmatpush.msra.mxu0 0.0
        %1283 = vmatpush.msra.mxu0 0.0
        %1284 = vmatpush.msra.mxu0 0.0
        %1285 = vmatpush.msra.mxu0 0.0
        %1286 = vmatpush.msra.mxu0 0.0
        %1287 = vmatpush.msra.mxu0 0.0
        %1288 = vmatpush.msra.mxu0 0.0
        %1289 = vmatpush.msra.mxu0 0.0
        %1290 = vmatpush.msra.mxu0 0.0
        %1291 = vmatpush.msra.mxu0 0.0
        %1292 = vmatpush.msra.mxu0 0.0
        %1293 = vmatpush.msra.mxu0 %v1254
        %1294 = vmatpush.msra.mxu0 %v1080
        %1295 = vmatpush.msra.mxu0 %v1078
        %1296 = vmatpush.msra.mxu0 %v1076
        %1297 = vmatpush.msra.mxu0 %v1074
        %1298 = vmatmul.f32.gmra.mxu0 %v1248
        %v1299 = vpop.f32.mrf.mxu0
        %v1300 = vadd.f32 %v1277, %v1299
        %1301 = vmatmul.f32.gmra.mxu0 %v1251
        %v1302 = vpop.f32.mrf.mxu0
        %v1303 = vadd.f32 %v1280, %v1302
        %1304 = vdwg.mxu0
        %1305 = vmatpush.msra.mxu0 %v1073
        %1306 = vmatpush.msra.mxu0 %v1071
        %1307 = vmatpush.msra.mxu0 %v1069
        %1308 = vmatpush.msra.mxu0 %v1067
        %1309 = vmatpush.msra.mxu0 %v1065
        %1310 = vmatpush.msra.mxu0 %v1063
        %1311 = vmatpush.msra.mxu0 %v1061
        %1312 = vmatpush.msra.mxu0 %v1059
        %1313 = vmatpush.msra.mxu0 %v1057
        %1314 = vmatpush.msra.mxu0 %v1055
        %1315 = vmatpush.msra.mxu0 %v1053
        %1316 = vmatpush.msra.mxu0 %v1051
        %1317 = vmatpush.msra.mxu0 %v1049
        %1318 = vmatpush.msra.mxu0 %v1047
        %1319 = vmatpush.msra.mxu0 %v1045
        %1320 = vmatpush.msra.mxu0 %v1043
        %1321 = vmatmul.f32.gmra.mxu0 %v1038
        %v1322 = vpop.f32.mrf.mxu0
        %v1323 = vadd.f32 %v1242, %v1322
        %1324 = vmatmul.f32.gmra.mxu0 %v1040
        %v1325 = vpop.f32.mrf.mxu0
        %v1326 = vadd.f32 %v1245, %v1325
        %1327 = vdwg.mxu0
        %1328 = vmatpush.msra.mxu0 0.0
        %1329 = vmatpush.msra.mxu0 0.0
        %1330 = vmatpush.msra.mxu0 0.0
        %1331 = vmatpush.msra.mxu0 0.0
        %1332 = vmatpush.msra.mxu0 0.0
        %1333 = vmatpush.msra.mxu0 0.0
        %1334 = vmatpush.msra.mxu0 0.0
        %1335 = vmatpush.msra.mxu0 0.0
        %1336 = vmatpush.msra.mxu0 0.0
        %1337 = vmatpush.msra.mxu0 0.0
        %1338 = vmatpush.msra.mxu0 0.0
        %1339 = vmatpush.msra.mxu0 %v1257
        %1340 = vmatpush.msra.mxu0 %v1081
        %1341 = vmatpush.msra.mxu0 %v1079
        %1342 = vmatpush.msra.mxu0 %v1077
        %1343 = vmatpush.msra.mxu0 %v1075
        %1344 = vmatmul.f32.gmra.mxu0 %v1248
        %v1345 = vpop.f32.mrf.mxu0
        %v1346 = vadd.f32 %v1323, %v1345
        %1347 = vmatmul.f32.gmra.mxu0 %v1251
        %v1348 = vpop.f32.mrf.mxu0
        %v1349 = vadd.f32 %v1326, %v1348
        %1350 = vdwg.mxu0
        %v1351 = vld [vmem:[#allocation2] sm:$0xfc]
        %v1352 = vld [vmem:[#allocation2 + $0x8] sm:$0xfc]
        %v1353 = vld [vmem:[#allocation2 + $0x10] sm:$0xf]
        %v1354 = vld [vmem:[#allocation2 + $0x18] sm:$0xf]
        %s1355 = scalar_lea.vmem %s3, 672
        %v1356 = vld [vmem:[%s1355] sm:$0xff]
        %v1357 = vld [vmem:[%s1355 + $0x8] sm:$0xff]
        %v1358 = vld [vmem:[%s1355 + $0x10] sm:$0xff]
        %v1359 = vld [vmem:[%s1355 + $0x18] sm:$0xff]
        %v1360 = vld [vmem:[%s1355 + $0x20] sm:$0xff]
        %v1361 = vld [vmem:[%s1355 + $0x28] sm:$0xff]
        %v1362 = vld [vmem:[%s1355 + $0x30] sm:$0xff]
        %v1363 = vld [vmem:[%s1355 + $0x38] sm:$0xff]
        %v1364 = vld [vmem:[%s1355 + $0x40] sm:$0xff]
        %v1365 = vld [vmem:[%s1355 + $0x48] sm:$0xff]
        %v1366 = vld [vmem:[%s1355 + $0x50] sm:$0xff]
        %v1367 = vld [vmem:[%s1355 + $0x58] sm:$0xff]
        %v1368 = vld [vmem:[%s1355 + $0x60] sm:$0xff]
        %v1369 = vld [vmem:[%s1355 + $0x68] sm:$0xff]
        %v1370 = vld [vmem:[%s1355 + $0x70] sm:$0xff]
        %v1371 = vld [vmem:[%s1355 + $0x78] sm:$0xff]
        %v1372 = vld [vmem:[%s1355 + $0x80] sm:$0xff]
        %v1373 = vld [vmem:[%s1355 + $0x88] sm:$0xff]
        %v1374 = vld [vmem:[%s1355 + $0x90] sm:$0xff]
        %v1375 = vld [vmem:[%s1355 + $0x98] sm:$0xff]
        %v1376 = vld [vmem:[%s1355 + $0xa0] sm:$0xff]
        %v1377 = vld [vmem:[%s1355 + $0xa8] sm:$0xff]
        %v1378 = vld [vmem:[%s1355 + $0xb0] sm:$0xff]
        %v1379 = vld [vmem:[%s1355 + $0xb8] sm:$0xff]
        %v1380 = vld [vmem:[%s1355 + $0xc0] sm:$0xff]
        %v1381 = vld [vmem:[%s1355 + $0xc8] sm:$0xff]
        %v1382 = vld [vmem:[%s1355 + $0xd0] sm:$0xff]
        %v1383 = vld [vmem:[%s1355 + $0xd8] sm:$0xff]
        %v1384 = vld [vmem:[%s1355 + $0xe0] sm:$0xff]
        %v1385 = vld [vmem:[%s1355 + $0xe8] sm:$0xff]
        %v1386 = vld [vmem:[%s1355 + $0xf0] sm:$0xff]
        %v1387 = vld [vmem:[%s1355 + $0xf8] sm:$0xff]
        %v1388 = vld [vmem:[%s1355 + $0x100] sm:$0xff]
        %v1389 = vld [vmem:[%s1355 + $0x108] sm:$0xff]
        %v1390 = vld [vmem:[%s1355 + $0x110] sm:$0xff]
        %v1391 = vld [vmem:[%s1355 + $0x118] sm:$0xff]
        %v1392 = vld [vmem:[%s1355 + $0x120] sm:$0xff]
        %v1393 = vld [vmem:[%s1355 + $0x128] sm:$0xff]
        %v1394 = vld [vmem:[%s1355 + $0x130] sm:$0xff]
        %v1395 = vld [vmem:[%s1355 + $0x138] sm:$0xff]
        %v1396 = vld [vmem:[%s1355 + $0x140] sm:$0x3]
        %v1397 = vld [vmem:[%s1355 + $0x148] sm:$0x3]
        %v1402 = vrot.slane %v1351, 2
        %v1403 = vrot.slane %v1353, 2
        %v1404 = vsel %vm559, %v1402, %v1403
        %v1405 = vrot.slane %v1352, 2
        %v1406 = vrot.slane %v1354, 2
        %v1407 = vsel %vm559, %v1405, %v1406
        %v1410 = vsel %vm1143, %v1407, 0
        %v1412 = vsel %vm1143, %v1406, 0
        %v1415 = vsel %vm1148, %v1396, 0
        %v1418 = vsel %vm1148, %v1397, 0
        %1420 = vmatpush.msra.mxu0 %v1386
        %1421 = vmatpush.msra.mxu0 %v1384
        %1422 = vmatpush.msra.mxu0 %v1382
        %1423 = vmatpush.msra.mxu0 %v1380
        %1424 = vmatpush.msra.mxu0 %v1378
        %1425 = vmatpush.msra.mxu0 %v1376
        %1426 = vmatpush.msra.mxu0 %v1374
        %1427 = vmatpush.msra.mxu0 %v1372
        %1428 = vmatpush.msra.mxu0 %v1370
        %1429 = vmatpush.msra.mxu0 %v1368
        %1430 = vmatpush.msra.mxu0 %v1366
        %1431 = vmatpush.msra.mxu0 %v1364
        %1432 = vmatpush.msra.mxu0 %v1362
        %1433 = vmatpush.msra.mxu0 %v1360
        %1434 = vmatpush.msra.mxu0 %v1358
        %1435 = vmatpush.msra.mxu0 %v1356
        %1436 = vmatmul.f32.gmra.mxu0 %v1404
        %v1437 = vpop.f32.mrf.mxu0
        %v1438 = vadd.f32 0.0, %v1437
        %1439 = vmatmul.f32.gmra.mxu0 %v1403
        %v1440 = vpop.f32.mrf.mxu0
        %v1441 = vadd.f32 0.0, %v1440
        %1442 = vdwg.mxu0
        %1443 = vmatpush.msra.mxu0 0.0
        %1444 = vmatpush.msra.mxu0 0.0
        %1445 = vmatpush.msra.mxu0 0.0
        %1446 = vmatpush.msra.mxu0 0.0
        %1447 = vmatpush.msra.mxu0 0.0
        %1448 = vmatpush.msra.mxu0 0.0
        %1449 = vmatpush.msra.mxu0 0.0
        %1450 = vmatpush.msra.mxu0 0.0
        %1451 = vmatpush.msra.mxu0 0.0
        %1452 = vmatpush.msra.mxu0 0.0
        %1453 = vmatpush.msra.mxu0 0.0
        %1454 = vmatpush.msra.mxu0 %v1415
        %1455 = vmatpush.msra.mxu0 %v1394
        %1456 = vmatpush.msra.mxu0 %v1392
        %1457 = vmatpush.msra.mxu0 %v1390
        %1458 = vmatpush.msra.mxu0 %v1388
        %1459 = vmatmul.f32.gmra.mxu0 %v1410
        %v1460 = vpop.f32.mrf.mxu0
        %v1461 = vadd.f32 %v1438, %v1460
        %1462 = vmatmul.f32.gmra.mxu0 %v1412
        %v1463 = vpop.f32.mrf.mxu0
        %v1464 = vadd.f32 %v1441, %v1463
        %1465 = vdwg.mxu0
        %1466 = vmatpush.msra.mxu0 %v1387
        %1467 = vmatpush.msra.mxu0 %v1385
        %1468 = vmatpush.msra.mxu0 %v1383
        %1469 = vmatpush.msra.mxu0 %v1381
        %1470 = vmatpush.msra.mxu0 %v1379
        %1471 = vmatpush.msra.mxu0 %v1377
        %1472 = vmatpush.msra.mxu0 %v1375
        %1473 = vmatpush.msra.mxu0 %v1373
        %1474 = vmatpush.msra.mxu0 %v1371
        %1475 = vmatpush.msra.mxu0 %v1369
        %1476 = vmatpush.msra.mxu0 %v1367
        %1477 = vmatpush.msra.mxu0 %v1365
        %1478 = vmatpush.msra.mxu0 %v1363
        %1479 = vmatpush.msra.mxu0 %v1361
        %1480 = vmatpush.msra.mxu0 %v1359
        %1481 = vmatpush.msra.mxu0 %v1357
        %1482 = vmatmul.f32.gmra.mxu0 %v1404
        %v1483 = vpop.f32.mrf.mxu0
        %v1484 = vadd.f32 0.0, %v1483
        %1485 = vmatmul.f32.gmra.mxu0 %v1403
        %v1486 = vpop.f32.mrf.mxu0
        %v1487 = vadd.f32 0.0, %v1486
        %1488 = vdwg.mxu0
        %1489 = vmatpush.msra.mxu0 0.0
        %1490 = vmatpush.msra.mxu0 0.0
        %1491 = vmatpush.msra.mxu0 0.0
        %1492 = vmatpush.msra.mxu0 0.0
        %1493 = vmatpush.msra.mxu0 0.0
        %1494 = vmatpush.msra.mxu0 0.0
        %1495 = vmatpush.msra.mxu0 0.0
        %1496 = vmatpush.msra.mxu0 0.0
        %1497 = vmatpush.msra.mxu0 0.0
        %1498 = vmatpush.msra.mxu0 0.0
        %1499 = vmatpush.msra.mxu0 0.0
        %1500 = vmatpush.msra.mxu0 %v1418
        %1501 = vmatpush.msra.mxu0 %v1395
        %1502 = vmatpush.msra.mxu0 %v1393
        %1503 = vmatpush.msra.mxu0 %v1391
        %1504 = vmatpush.msra.mxu0 %v1389
        %1505 = vmatmul.f32.gmra.mxu0 %v1410
        %v1506 = vpop.f32.mrf.mxu0
        %v1507 = vadd.f32 %v1484, %v1506
        %1508 = vmatmul.f32.gmra.mxu0 %v1412
        %v1509 = vpop.f32.mrf.mxu0
        %v1510 = vadd.f32 %v1487, %v1509
        %1511 = vdwg.mxu0
        %v1512 = vadd.f32 %v1300, %v1461
        %v1513 = vadd.f32 %v1346, %v1507
        %v1514 = vadd.f32 %v1303, %v1464
        %v1515 = vadd.f32 %v1349, %v1510
        %v1516 = vld [vmem:[#allocation2] sm:$0xf8]
        %v1517 = vld [vmem:[#allocation2 + $0x8] sm:$0xf8]
        %v1518 = vld [vmem:[#allocation2 + $0x10] sm:$0x1f]
        %v1519 = vld [vmem:[#allocation2 + $0x18] sm:$0x1f]
        %s1520 = scalar_lea.vmem %s3, 1008
        %v1521 = vld [vmem:[%s1520] sm:$0xff]
        %v1522 = vld [vmem:[%s1520 + $0x8] sm:$0xff]
        %v1523 = vld [vmem:[%s1520 + $0x10] sm:$0xff]
        %v1524 = vld [vmem:[%s1520 + $0x18] sm:$0xff]
        %v1525 = vld [vmem:[%s1520 + $0x20] sm:$0xff]
        %v1526 = vld [vmem:[%s1520 + $0x28] sm:$0xff]
        %v1527 = vld [vmem:[%s1520 + $0x30] sm:$0xff]
        %v1528 = vld [vmem:[%s1520 + $0x38] sm:$0xff]
        %v1529 = vld [vmem:[%s1520 + $0x40] sm:$0xff]
        %v1530 = vld [vmem:[%s1520 + $0x48] sm:$0xff]
        %v1531 = vld [vmem:[%s1520 + $0x50] sm:$0xff]
        %v1532 = vld [vmem:[%s1520 + $0x58] sm:$0xff]
        %v1533 = vld [vmem:[%s1520 + $0x60] sm:$0xff]
        %v1534 = vld [vmem:[%s1520 + $0x68] sm:$0xff]
        %v1535 = vld [vmem:[%s1520 + $0x70] sm:$0xff]
        %v1536 = vld [vmem:[%s1520 + $0x78] sm:$0xff]
        %v1537 = vld [vmem:[%s1520 + $0x80] sm:$0xff]
        %v1538 = vld [vmem:[%s1520 + $0x88] sm:$0xff]
        %v1539 = vld [vmem:[%s1520 + $0x90] sm:$0xff]
        %v1540 = vld [vmem:[%s1520 + $0x98] sm:$0xff]
        %v1541 = vld [vmem:[%s1520 + $0xa0] sm:$0xff]
        %v1542 = vld [vmem:[%s1520 + $0xa8] sm:$0xff]
        %v1543 = vld [vmem:[%s1520 + $0xb0] sm:$0xff]
        %v1544 = vld [vmem:[%s1520 + $0xb8] sm:$0xff]
        %v1545 = vld [vmem:[%s1520 + $0xc0] sm:$0xff]
        %v1546 = vld [vmem:[%s1520 + $0xc8] sm:$0xff]
        %v1547 = vld [vmem:[%s1520 + $0xd0] sm:$0xff]
        %v1548 = vld [vmem:[%s1520 + $0xd8] sm:$0xff]
        %v1549 = vld [vmem:[%s1520 + $0xe0] sm:$0xff]
        %v1550 = vld [vmem:[%s1520 + $0xe8] sm:$0xff]
        %v1551 = vld [vmem:[%s1520 + $0xf0] sm:$0xff]
        %v1552 = vld [vmem:[%s1520 + $0xf8] sm:$0xff]
        %v1553 = vld [vmem:[%s1520 + $0x100] sm:$0xff]
        %v1554 = vld [vmem:[%s1520 + $0x108] sm:$0xff]
        %v1555 = vld [vmem:[%s1520 + $0x110] sm:$0xff]
        %v1556 = vld [vmem:[%s1520 + $0x118] sm:$0xff]
        %v1557 = vld [vmem:[%s1520 + $0x120] sm:$0xff]
        %v1558 = vld [vmem:[%s1520 + $0x128] sm:$0xff]
        %v1559 = vld [vmem:[%s1520 + $0x130] sm:$0xff]
        %v1560 = vld [vmem:[%s1520 + $0x138] sm:$0xff]
        %v1561 = vld [vmem:[%s1520 + $0x140] sm:$0x3]
        %v1562 = vld [vmem:[%s1520 + $0x148] sm:$0x3]
        %v1567 = vrot.slane %v1516, 3
        %v1568 = vrot.slane %v1518, 3
        %v1569 = vsel %vm650, %v1567, %v1568
        %v1570 = vrot.slane %v1517, 3
        %v1571 = vrot.slane %v1519, 3
        %v1572 = vsel %vm650, %v1570, %v1571
        %v1575 = vsel %vm1143, %v1572, 0
        %v1577 = vsel %vm1143, %v1571, 0
        %v1580 = vsel %vm1148, %v1561, 0
        %v1583 = vsel %vm1148, %v1562, 0
        %1585 = vmatpush.msra.mxu0 %v1551
        %1586 = vmatpush.msra.mxu0 %v1549
        %1587 = vmatpush.msra.mxu0 %v1547
        %1588 = vmatpush.msra.mxu0 %v1545
        %1589 = vmatpush.msra.mxu0 %v1543
        %1590 = vmatpush.msra.mxu0 %v1541
        %1591 = vmatpush.msra.mxu0 %v1539
        %1592 = vmatpush.msra.mxu0 %v1537
        %1593 = vmatpush.msra.mxu0 %v1535
        %1594 = vmatpush.msra.mxu0 %v1533
        %1595 = vmatpush.msra.mxu0 %v1531
        %1596 = vmatpush.msra.mxu0 %v1529
        %1597 = vmatpush.msra.mxu0 %v1527
        %1598 = vmatpush.msra.mxu0 %v1525
        %1599 = vmatpush.msra.mxu0 %v1523
        %1600 = vmatpush.msra.mxu0 %v1521
        %1601 = vmatmul.f32.gmra.mxu0 %v1569
        %v1602 = vpop.f32.mrf.mxu0
        %v1603 = vadd.f32 0.0, %v1602
        %1604 = vmatmul.f32.gmra.mxu0 %v1568
        %v1605 = vpop.f32.mrf.mxu0
        %v1606 = vadd.f32 0.0, %v1605
        %1607 = vdwg.mxu0
        %1608 = vmatpush.msra.mxu0 0.0
        %1609 = vmatpush.msra.mxu0 0.0
        %1610 = vmatpush.msra.mxu0 0.0
        %1611 = vmatpush.msra.mxu0 0.0
        %1612 = vmatpush.msra.mxu0 0.0
        %1613 = vmatpush.msra.mxu0 0.0
        %1614 = vmatpush.msra.mxu0 0.0
        %1615 = vmatpush.msra.mxu0 0.0
        %1616 = vmatpush.msra.mxu0 0.0
        %1617 = vmatpush.msra.mxu0 0.0
        %1618 = vmatpush.msra.mxu0 0.0
        %1619 = vmatpush.msra.mxu0 %v1580
        %1620 = vmatpush.msra.mxu0 %v1559
        %1621 = vmatpush.msra.mxu0 %v1557
        %1622 = vmatpush.msra.mxu0 %v1555
        %1623 = vmatpush.msra.mxu0 %v1553
        %1624 = vmatmul.f32.gmra.mxu0 %v1575
        %v1625 = vpop.f32.mrf.mxu0
        %v1626 = vadd.f32 %v1603, %v1625
        %1627 = vmatmul.f32.gmra.mxu0 %v1577
        %v1628 = vpop.f32.mrf.mxu0
        %v1629 = vadd.f32 %v1606, %v1628
        %1630 = vdwg.mxu0
        %1631 = vmatpush.msra.mxu0 %v1552
        %1632 = vmatpush.msra.mxu0 %v1550
        %1633 = vmatpush.msra.mxu0 %v1548
        %1634 = vmatpush.msra.mxu0 %v1546
        %1635 = vmatpush.msra.mxu0 %v1544
        %1636 = vmatpush.msra.mxu0 %v1542
        %1637 = vmatpush.msra.mxu0 %v1540
        %1638 = vmatpush.msra.mxu0 %v1538
        %1639 = vmatpush.msra.mxu0 %v1536
        %1640 = vmatpush.msra.mxu0 %v1534
        %1641 = vmatpush.msra.mxu0 %v1532
        %1642 = vmatpush.msra.mxu0 %v1530
        %1643 = vmatpush.msra.mxu0 %v1528
        %1644 = vmatpush.msra.mxu0 %v1526
        %1645 = vmatpush.msra.mxu0 %v1524
        %1646 = vmatpush.msra.mxu0 %v1522
        %1647 = vmatmul.f32.gmra.mxu0 %v1569
        %v1648 = vpop.f32.mrf.mxu0
        %v1649 = vadd.f32 0.0, %v1648
        %1650 = vmatmul.f32.gmra.mxu0 %v1568
        %v1651 = vpop.f32.mrf.mxu0
        %v1652 = vadd.f32 0.0, %v1651
        %1653 = vdwg.mxu0
        %1654 = vmatpush.msra.mxu0 0.0
        %1655 = vmatpush.msra.mxu0 0.0
        %1656 = vmatpush.msra.mxu0 0.0
        %1657 = vmatpush.msra.mxu0 0.0
        %1658 = vmatpush.msra.mxu0 0.0
        %1659 = vmatpush.msra.mxu0 0.0
        %1660 = vmatpush.msra.mxu0 0.0
        %1661 = vmatpush.msra.mxu0 0.0
        %1662 = vmatpush.msra.mxu0 0.0
        %1663 = vmatpush.msra.mxu0 0.0
        %1664 = vmatpush.msra.mxu0 0.0
        %1665 = vmatpush.msra.mxu0 %v1583
        %1666 = vmatpush.msra.mxu0 %v1560
        %1667 = vmatpush.msra.mxu0 %v1558
        %1668 = vmatpush.msra.mxu0 %v1556
        %1669 = vmatpush.msra.mxu0 %v1554
        %1670 = vmatmul.f32.gmra.mxu0 %v1575
        %v1671 = vpop.f32.mrf.mxu0
        %v1672 = vadd.f32 %v1649, %v1671
        %1673 = vmatmul.f32.gmra.mxu0 %v1577
        %v1674 = vpop.f32.mrf.mxu0
        %v1675 = vadd.f32 %v1652, %v1674
        %1676 = vdwg.mxu0
        %v1677 = vadd.f32 %v1512, %v1626
        %v1678 = vadd.f32 %v1513, %v1672
        %v1679 = vadd.f32 %v1514, %v1629
        %v1680 = vadd.f32 %v1515, %v1675
        %v1681 = vld [vmem:[#allocation2] sm:$0xf0]
        %v1682 = vld [vmem:[#allocation2 + $0x8] sm:$0xf0]
        %v1683 = vld [vmem:[#allocation2 + $0x10] sm:$0x3f]
        %v1684 = vld [vmem:[#allocation2 + $0x18] sm:$0x3f]
        %s1685 = scalar_lea.vmem %s3, 1344
        %v1686 = vld [vmem:[%s1685] sm:$0xff]
        %v1687 = vld [vmem:[%s1685 + $0x8] sm:$0xff]
        %v1688 = vld [vmem:[%s1685 + $0x10] sm:$0xff]
        %v1689 = vld [vmem:[%s1685 + $0x18] sm:$0xff]
        %v1690 = vld [vmem:[%s1685 + $0x20] sm:$0xff]
        %v1691 = vld [vmem:[%s1685 + $0x28] sm:$0xff]
        %v1692 = vld [vmem:[%s1685 + $0x30] sm:$0xff]
        %v1693 = vld [vmem:[%s1685 + $0x38] sm:$0xff]
        %v1694 = vld [vmem:[%s1685 + $0x40] sm:$0xff]
        %v1695 = vld [vmem:[%s1685 + $0x48] sm:$0xff]
        %v1696 = vld [vmem:[%s1685 + $0x50] sm:$0xff]
        %v1697 = vld [vmem:[%s1685 + $0x58] sm:$0xff]
        %v1698 = vld [vmem:[%s1685 + $0x60] sm:$0xff]
        %v1699 = vld [vmem:[%s1685 + $0x68] sm:$0xff]
        %v1700 = vld [vmem:[%s1685 + $0x70] sm:$0xff]
        %v1701 = vld [vmem:[%s1685 + $0x78] sm:$0xff]
        %v1702 = vld [vmem:[%s1685 + $0x80] sm:$0xff]
        %v1703 = vld [vmem:[%s1685 + $0x88] sm:$0xff]
        %v1704 = vld [vmem:[%s1685 + $0x90] sm:$0xff]
        %v1705 = vld [vmem:[%s1685 + $0x98] sm:$0xff]
        %v1706 = vld [vmem:[%s1685 + $0xa0] sm:$0xff]
        %v1707 = vld [vmem:[%s1685 + $0xa8] sm:$0xff]
        %v1708 = vld [vmem:[%s1685 + $0xb0] sm:$0xff]
        %v1709 = vld [vmem:[%s1685 + $0xb8] sm:$0xff]
        %v1710 = vld [vmem:[%s1685 + $0xc0] sm:$0xff]
        %v1711 = vld [vmem:[%s1685 + $0xc8] sm:$0xff]
        %v1712 = vld [vmem:[%s1685 + $0xd0] sm:$0xff]
        %v1713 = vld [vmem:[%s1685 + $0xd8] sm:$0xff]
        %v1714 = vld [vmem:[%s1685 + $0xe0] sm:$0xff]
        %v1715 = vld [vmem:[%s1685 + $0xe8] sm:$0xff]
        %v1716 = vld [vmem:[%s1685 + $0xf0] sm:$0xff]
        %v1717 = vld [vmem:[%s1685 + $0xf8] sm:$0xff]
        %v1718 = vld [vmem:[%s1685 + $0x100] sm:$0xff]
        %v1719 = vld [vmem:[%s1685 + $0x108] sm:$0xff]
        %v1720 = vld [vmem:[%s1685 + $0x110] sm:$0xff]
        %v1721 = vld [vmem:[%s1685 + $0x118] sm:$0xff]
        %v1722 = vld [vmem:[%s1685 + $0x120] sm:$0xff]
        %v1723 = vld [vmem:[%s1685 + $0x128] sm:$0xff]
        %v1724 = vld [vmem:[%s1685 + $0x130] sm:$0xff]
        %v1725 = vld [vmem:[%s1685 + $0x138] sm:$0xff]
        %v1726 = vld [vmem:[%s1685 + $0x140] sm:$0x3]
        %v1727 = vld [vmem:[%s1685 + $0x148] sm:$0x3]
        %v1732 = vrot.slane %v1681, 4
        %v1733 = vrot.slane %v1683, 4
        %v1734 = vsel %vm741, %v1732, %v1733
        %v1735 = vrot.slane %v1682, 4
        %v1736 = vrot.slane %v1684, 4
        %v1737 = vsel %vm741, %v1735, %v1736
        %v1740 = vsel %vm1143, %v1737, 0
        %v1742 = vsel %vm1143, %v1736, 0
        %v1745 = vsel %vm1148, %v1726, 0
        %v1748 = vsel %vm1148, %v1727, 0
        %1750 = vmatpush.msra.mxu0 %v1716
        %1751 = vmatpush.msra.mxu0 %v1714
        %1752 = vmatpush.msra.mxu0 %v1712
        %1753 = vmatpush.msra.mxu0 %v1710
        %1754 = vmatpush.msra.mxu0 %v1708
        %1755 = vmatpush.msra.mxu0 %v1706
        %1756 = vmatpush.msra.mxu0 %v1704
        %1757 = vmatpush.msra.mxu0 %v1702
        %1758 = vmatpush.msra.mxu0 %v1700
        %1759 = vmatpush.msra.mxu0 %v1698
        %1760 = vmatpush.msra.mxu0 %v1696
        %1761 = vmatpush.msra.mxu0 %v1694
        %1762 = vmatpush.msra.mxu0 %v1692
        %1763 = vmatpush.msra.mxu0 %v1690
        %1764 = vmatpush.msra.mxu0 %v1688
        %1765 = vmatpush.msra.mxu0 %v1686
        %1766 = vmatmul.f32.gmra.mxu0 %v1734
        %v1767 = vpop.f32.mrf.mxu0
        %v1768 = vadd.f32 0.0, %v1767
        %1769 = vmatmul.f32.gmra.mxu0 %v1733
        %v1770 = vpop.f32.mrf.mxu0
        %v1771 = vadd.f32 0.0, %v1770
        %1772 = vdwg.mxu0
        %1773 = vmatpush.msra.mxu0 0.0
        %1774 = vmatpush.msra.mxu0 0.0
        %1775 = vmatpush.msra.mxu0 0.0
        %1776 = vmatpush.msra.mxu0 0.0
        %1777 = vmatpush.msra.mxu0 0.0
        %1778 = vmatpush.msra.mxu0 0.0
        %1779 = vmatpush.msra.mxu0 0.0
        %1780 = vmatpush.msra.mxu0 0.0
        %1781 = vmatpush.msra.mxu0 0.0
        %1782 = vmatpush.msra.mxu0 0.0
        %1783 = vmatpush.msra.mxu0 0.0
        %1784 = vmatpush.msra.mxu0 %v1745
        %1785 = vmatpush.msra.mxu0 %v1724
        %1786 = vmatpush.msra.mxu0 %v1722
        %1787 = vmatpush.msra.mxu0 %v1720
        %1788 = vmatpush.msra.mxu0 %v1718
        %1789 = vmatmul.f32.gmra.mxu0 %v1740
        %v1790 = vpop.f32.mrf.mxu0
        %v1791 = vadd.f32 %v1768, %v1790
        %1792 = vmatmul.f32.gmra.mxu0 %v1742
        %v1793 = vpop.f32.mrf.mxu0
        %v1794 = vadd.f32 %v1771, %v1793
        %1795 = vdwg.mxu0
        %1796 = vmatpush.msra.mxu0 %v1717
        %1797 = vmatpush.msra.mxu0 %v1715
        %1798 = vmatpush.msra.mxu0 %v1713
        %1799 = vmatpush.msra.mxu0 %v1711
        %1800 = vmatpush.msra.mxu0 %v1709
        %1801 = vmatpush.msra.mxu0 %v1707
        %1802 = vmatpush.msra.mxu0 %v1705
        %1803 = vmatpush.msra.mxu0 %v1703
        %1804 = vmatpush.msra.mxu0 %v1701
        %1805 = vmatpush.msra.mxu0 %v1699
        %1806 = vmatpush.msra.mxu0 %v1697
        %1807 = vmatpush.msra.mxu0 %v1695
        %1808 = vmatpush.msra.mxu0 %v1693
        %1809 = vmatpush.msra.mxu0 %v1691
        %1810 = vmatpush.msra.mxu0 %v1689
        %1811 = vmatpush.msra.mxu0 %v1687
        %1812 = vmatmul.f32.gmra.mxu0 %v1734
        %v1813 = vpop.f32.mrf.mxu0
        %v1814 = vadd.f32 0.0, %v1813
        %1815 = vmatmul.f32.gmra.mxu0 %v1733
        %v1816 = vpop.f32.mrf.mxu0
        %v1817 = vadd.f32 0.0, %v1816
        %1818 = vdwg.mxu0
        %1819 = vmatpush.msra.mxu0 0.0
        %1820 = vmatpush.msra.mxu0 0.0
        %1821 = vmatpush.msra.mxu0 0.0
        %1822 = vmatpush.msra.mxu0 0.0
        %1823 = vmatpush.msra.mxu0 0.0
        %1824 = vmatpush.msra.mxu0 0.0
        %1825 = vmatpush.msra.mxu0 0.0
        %1826 = vmatpush.msra.mxu0 0.0
        %1827 = vmatpush.msra.mxu0 0.0
        %1828 = vmatpush.msra.mxu0 0.0
        %1829 = vmatpush.msra.mxu0 0.0
        %1830 = vmatpush.msra.mxu0 %v1748
        %1831 = vmatpush.msra.mxu0 %v1725
        %1832 = vmatpush.msra.mxu0 %v1723
        %1833 = vmatpush.msra.mxu0 %v1721
        %1834 = vmatpush.msra.mxu0 %v1719
        %1835 = vmatmul.f32.gmra.mxu0 %v1740
        %v1836 = vpop.f32.mrf.mxu0
        %v1837 = vadd.f32 %v1814, %v1836
        %1838 = vmatmul.f32.gmra.mxu0 %v1742
        %v1839 = vpop.f32.mrf.mxu0
        %v1840 = vadd.f32 %v1817, %v1839
        %1841 = vdwg.mxu0
        %v1842 = vadd.f32 %v1677, %v1791
        %v1843 = vadd.f32 %v1678, %v1837
        %v1844 = vadd.f32 %v1679, %v1794
        %v1845 = vadd.f32 %v1680, %v1840
        %v1846 = vld [vmem:[%s4] sm:$0x3]
        %v1848 = vperm.slane %v1846, 0
        %v1849 = vperm.slane %v1846, 1
        %v1852 = vadd.f32 %v1842, %v1848
        %v1853 = vadd.f32 %v1843, %v1849
        %v1854 = vadd.f32 %v1844, %v1848
        %v1855 = vadd.f32 %v1845, %v1849
        %v1856 = vmax.f32 %v1852, 0.0
        %v1857 = vmax.f32 %v1853, 0.0
        %v1858 = vmax.f32 %v1854, 0.0
        %v1859 = vmax.f32 %v1855, 0.0
        %1864 = vrot.lane.b32.xlu0 %v1856, 112
        %v1865 = vpop.permute.xlu0 %1864
        %1866 = vrot.lane.b32.xlu0 %v1857, 112
        %v1867 = vpop.permute.xlu0 %1866
        %1868 = vrot.lane.b32.xlu0 %v1858, 112
        %v1869 = vpop.permute.xlu0 %1868
        %1870 = vrot.lane.b32.xlu0 %v1859, 112
        %v1871 = vpop.permute.xlu0 %1870
        %vm1872 = vcmask 916480
        %v1873 = vsel %vm1872, %v1865, %v1867
        %v1874 = vsel %vm1872, %v1869, %v1871
        %v1879 = vmax.f32 %v1856, %v1873
        %v1880 = vmax.f32 %v1857, %v1867
        %v1881 = vmax.f32 %v1858, %v1874
        %v1882 = vmax.f32 %v1859, %v1871
        %v1885 = vrot.slane %v1879, 1
        %v1886 = vrot.slane %v1880, 1
        %v1889 = vmax.f32 %v1879, %v1885
        %v1890 = vmax.f32 %v1880, %v1886
        %v1891 = vld [vmem:[%s5] sm:$0xff]
        %v1892 = vld [vmem:[%s5 + $0x8] sm:$0xff]
        %v1893 = vld [vmem:[%s5 + $0x10] sm:$0xff]
        %v1894 = vld [vmem:[%s5 + $0x18] sm:$0xff]
        %v1895 = vld [vmem:[%s5 + $0x20] sm:$0xff]
        %v1896 = vld [vmem:[%s5 + $0x28] sm:$0xff]
        %v1897 = vld [vmem:[%s5 + $0x30] sm:$0xff]
        %v1898 = vld [vmem:[%s5 + $0x38] sm:$0xff]
        %v1899 = vld [vmem:[%s5 + $0x40] sm:$0xff]
        %v1900 = vld [vmem:[%s5 + $0x48] sm:$0xff]
        %v1901 = vld [vmem:[%s5 + $0x50] sm:$0xff]
        %v1902 = vld [vmem:[%s5 + $0x58] sm:$0xff]
        %v1903 = vld [vmem:[%s5 + $0x60] sm:$0xff]
        %v1904 = vld [vmem:[%s5 + $0x68] sm:$0xff]
        %v1905 = vld [vmem:[%s5 + $0x70] sm:$0xff]
        %v1906 = vld [vmem:[%s5 + $0x78] sm:$0xff]
        %v1907 = vld [vmem:[%s5 + $0x80] sm:$0xff]
        %v1908 = vld [vmem:[%s5 + $0x88] sm:$0xff]
        %s1909 = scalar_lea.vmem %s5, 144
        %v1910 = vld [vmem:[%s1909] sm:$0xff]
        %v1911 = vld [vmem:[%s1909 + $0x8] sm:$0xff]
        %v1912 = vld [vmem:[%s1909 + $0x10] sm:$0xff]
        %v1913 = vld [vmem:[%s1909 + $0x18] sm:$0xff]
        %v1914 = vld [vmem:[%s1909 + $0x20] sm:$0xff]
        %v1915 = vld [vmem:[%s1909 + $0x28] sm:$0xff]
        %v1916 = vld [vmem:[%s1909 + $0x30] sm:$0xff]
        %v1917 = vld [vmem:[%s1909 + $0x38] sm:$0xff]
        %v1918 = vld [vmem:[%s1909 + $0x40] sm:$0xff]
        %v1919 = vld [vmem:[%s1909 + $0x48] sm:$0xff]
        %v1920 = vld [vmem:[%s1909 + $0x50] sm:$0xff]
        %v1921 = vld [vmem:[%s1909 + $0x58] sm:$0xff]
        %v1922 = vld [vmem:[%s1909 + $0x60] sm:$0xff]
        %v1923 = vld [vmem:[%s1909 + $0x68] sm:$0xff]
        %v1924 = vld [vmem:[%s1909 + $0x70] sm:$0xff]
        %v1925 = vld [vmem:[%s1909 + $0x78] sm:$0xff]
        %v1926 = vld [vmem:[%s1909 + $0x80] sm:$0xff]
        %v1927 = vld [vmem:[%s1909 + $0x88] sm:$0xff]
        %v1930 = vrot.slane %v1889, 2
        %v1931 = vrot.slane %v1890, 2
        %vm1933 = vcmask 130048
        %v1934 = vsel %vm1933, %v1931, 0
        %1936 = vmatpush.msra.mxu0 %v1925
        %1937 = vmatpush.msra.mxu0 %v1924
        %1938 = vmatpush.msra.mxu0 %v1923
        %1939 = vmatpush.msra.mxu0 %v1922
        %1940 = vmatpush.msra.mxu0 %v1921
        %1941 = vmatpush.msra.mxu0 %v1920
        %1942 = vmatpush.msra.mxu0 %v1919
        %1943 = vmatpush.msra.mxu0 %v1918
        %1944 = vmatpush.msra.mxu0 %v1917
        %1945 = vmatpush.msra.mxu0 %v1916
        %1946 = vmatpush.msra.mxu0 %v1915
        %1947 = vmatpush.msra.mxu0 %v1914
        %1948 = vmatpush.msra.mxu0 %v1913
        %1949 = vmatpush.msra.mxu0 %v1912
        %1950 = vmatpush.msra.mxu0 %v1911
        %1951 = vmatpush.msra.mxu0 %v1910
        %1952 = vmatmul.f32.gmra.mxu0 %v1930
        %v1953 = vpop.f32.mrf.mxu0
        %v1954 = vadd.f32 0.0, %v1953
        %1955 = vdwg.mxu0
        %1956 = vmatpush.msra.mxu0 0.0
        %1957 = vmatpush.msra.mxu0 0.0
        %1958 = vmatpush.msra.mxu0 0.0
        %1959 = vmatpush.msra.mxu0 0.0
        %1960 = vmatpush.msra.mxu0 0.0
        %1961 = vmatpush.msra.mxu0 0.0
        %1962 = vmatpush.msra.mxu0 0.0
        %1963 = vmatpush.msra.mxu0 0.0
        %1964 = vmatpush.msra.mxu0 0.0
        %1965 = vmatpush.msra.mxu0 0.0
        %1966 = vmatpush.msra.mxu0 0.0
        %1967 = vmatpush.msra.mxu0 0.0
        %1968 = vmatpush.msra.mxu0 0.0
        %1969 = vmatpush.msra.mxu0 0.0
        %1970 = vmatpush.msra.mxu0 %v1927
        %1971 = vmatpush.msra.mxu0 %v1926
        %1972 = vmatmul.f32.gmra.mxu0 %v1934
        %v1973 = vpop.f32.mrf.mxu0
        %v1974 = vadd.f32 %v1954, %v1973
        %1975 = vdwg.mxu0
        %v1976 = vsel %vm1933, %v1890, 0
        %1978 = vmatpush.msra.mxu0 %v1906
        %1979 = vmatpush.msra.mxu0 %v1905
        %1980 = vmatpush.msra.mxu0 %v1904
        %1981 = vmatpush.msra.mxu0 %v1903
        %1982 = vmatpush.msra.mxu0 %v1902
        %1983 = vmatpush.msra.mxu0 %v1901
        %1984 = vmatpush.msra.mxu0 %v1900
        %1985 = vmatpush.msra.mxu0 %v1899
        %1986 = vmatpush.msra.mxu0 %v1898
        %1987 = vmatpush.msra.mxu0 %v1897
        %1988 = vmatpush.msra.mxu0 %v1896
        %1989 = vmatpush.msra.mxu0 %v1895
        %1990 = vmatpush.msra.mxu0 %v1894
        %1991 = vmatpush.msra.mxu0 %v1893
        %1992 = vmatpush.msra.mxu0 %v1892
        %1993 = vmatpush.msra.mxu0 %v1891
        %1994 = vmatmul.f32.gmra.mxu0 %v1889
        %v1995 = vpop.f32.mrf.mxu0
        %v1996 = vadd.f32 %v1974, %v1995
        %1997 = vdwg.mxu0
        %1998 = vmatpush.msra.mxu0 0.0
        %1999 = vmatpush.msra.mxu0 0.0
        %2000 = vmatpush.msra.mxu0 0.0
        %2001 = vmatpush.msra.mxu0 0.0
        %2002 = vmatpush.msra.mxu0 0.0
        %2003 = vmatpush.msra.mxu0 0.0
        %2004 = vmatpush.msra.mxu0 0.0
        %2005 = vmatpush.msra.mxu0 0.0
        %2006 = vmatpush.msra.mxu0 0.0
        %2007 = vmatpush.msra.mxu0 0.0
        %2008 = vmatpush.msra.mxu0 0.0
        %2009 = vmatpush.msra.mxu0 0.0
        %2010 = vmatpush.msra.mxu0 0.0
        %2011 = vmatpush.msra.mxu0 0.0
        %2012 = vmatpush.msra.mxu0 %v1908
        %2013 = vmatpush.msra.mxu0 %v1907
        %2014 = vmatmul.f32.gmra.mxu0 %v1976
        %v2015 = vpop.f32.mrf.mxu0
        %v2016 = vadd.f32 %v1996, %v2015
        %2017 = vdwg.mxu0
        %s2018 = scalar_lea.vmem %s5, 288
        %v2019 = vld [vmem:[%s2018] sm:$0xff]
        %v2020 = vld [vmem:[%s2018 + $0x8] sm:$0xff]
        %v2021 = vld [vmem:[%s2018 + $0x10] sm:$0xff]
        %v2022 = vld [vmem:[%s2018 + $0x18] sm:$0xff]
        %v2023 = vld [vmem:[%s2018 + $0x20] sm:$0xff]
        %v2024 = vld [vmem:[%s2018 + $0x28] sm:$0xff]
        %v2025 = vld [vmem:[%s2018 + $0x30] sm:$0xff]
        %v2026 = vld [vmem:[%s2018 + $0x38] sm:$0xff]
        %v2027 = vld [vmem:[%s2018 + $0x40] sm:$0xff]
        %v2028 = vld [vmem:[%s2018 + $0x48] sm:$0xff]
        %v2029 = vld [vmem:[%s2018 + $0x50] sm:$0xff]
        %v2030 = vld [vmem:[%s2018 + $0x58] sm:$0xff]
        %v2031 = vld [vmem:[%s2018 + $0x60] sm:$0xff]
        %v2032 = vld [vmem:[%s2018 + $0x68] sm:$0xff]
        %v2033 = vld [vmem:[%s2018 + $0x70] sm:$0xff]
        %v2034 = vld [vmem:[%s2018 + $0x78] sm:$0xff]
        %v2035 = vld [vmem:[%s2018 + $0x80] sm:$0xff]
        %v2036 = vld [vmem:[%s2018 + $0x88] sm:$0xff]
        %v2037 = vrot.slane %v1889, 4
        %v2038 = vrot.slane %v1890, 4
        %v2040 = vsel %vm1933, %v2038, 0
        %2042 = vmatpush.msra.mxu0 %v2034
        %2043 = vmatpush.msra.mxu0 %v2033
        %2044 = vmatpush.msra.mxu0 %v2032
        %2045 = vmatpush.msra.mxu0 %v2031
        %2046 = vmatpush.msra.mxu0 %v2030
        %2047 = vmatpush.msra.mxu0 %v2029
        %2048 = vmatpush.msra.mxu0 %v2028
        %2049 = vmatpush.msra.mxu0 %v2027
        %2050 = vmatpush.msra.mxu0 %v2026
        %2051 = vmatpush.msra.mxu0 %v2025
        %2052 = vmatpush.msra.mxu0 %v2024
        %2053 = vmatpush.msra.mxu0 %v2023
        %2054 = vmatpush.msra.mxu0 %v2022
        %2055 = vmatpush.msra.mxu0 %v2021
        %2056 = vmatpush.msra.mxu0 %v2020
        %2057 = vmatpush.msra.mxu0 %v2019
        %2058 = vmatmul.f32.gmra.mxu0 %v2037
        %v2059 = vpop.f32.mrf.mxu0
        %v2060 = vadd.f32 0.0, %v2059
        %2061 = vdwg.mxu0
        %2062 = vmatpush.msra.mxu0 0.0
        %2063 = vmatpush.msra.mxu0 0.0
        %2064 = vmatpush.msra.mxu0 0.0
        %2065 = vmatpush.msra.mxu0 0.0
        %2066 = vmatpush.msra.mxu0 0.0
        %2067 = vmatpush.msra.mxu0 0.0
        %2068 = vmatpush.msra.mxu0 0.0
        %2069 = vmatpush.msra.mxu0 0.0
        %2070 = vmatpush.msra.mxu0 0.0
        %2071 = vmatpush.msra.mxu0 0.0
        %2072 = vmatpush.msra.mxu0 0.0
        %2073 = vmatpush.msra.mxu0 0.0
        %2074 = vmatpush.msra.mxu0 0.0
        %2075 = vmatpush.msra.mxu0 0.0
        %2076 = vmatpush.msra.mxu0 %v2036
        %2077 = vmatpush.msra.mxu0 %v2035
        %2078 = vmatmul.f32.gmra.mxu0 %v2040
        %v2079 = vpop.f32.mrf.mxu0
        %v2080 = vadd.f32 %v2060, %v2079
        %2081 = vdwg.mxu0
        %v2082 = vadd.f32 %v2016, %v2080
        %s2083 = scalar_lea.vmem %s5, 432
        %v2084 = vld [vmem:[%s2083] sm:$0xff]
        %v2085 = vld [vmem:[%s2083 + $0x8] sm:$0xff]
        %v2086 = vld [vmem:[%s2083 + $0x10] sm:$0xff]
        %v2087 = vld [vmem:[%s2083 + $0x18] sm:$0xff]
        %v2088 = vld [vmem:[%s2083 + $0x20] sm:$0xff]
        %v2089 = vld [vmem:[%s2083 + $0x28] sm:$0xff]
        %v2090 = vld [vmem:[%s2083 + $0x30] sm:$0xff]
        %v2091 = vld [vmem:[%s2083 + $0x38] sm:$0xff]
        %v2092 = vld [vmem:[%s2083 + $0x40] sm:$0xff]
        %v2093 = vld [vmem:[%s2083 + $0x48] sm:$0xff]
        %v2094 = vld [vmem:[%s2083 + $0x50] sm:$0xff]
        %v2095 = vld [vmem:[%s2083 + $0x58] sm:$0xff]
        %v2096 = vld [vmem:[%s2083 + $0x60] sm:$0xff]
        %v2097 = vld [vmem:[%s2083 + $0x68] sm:$0xff]
        %v2098 = vld [vmem:[%s2083 + $0x70] sm:$0xff]
        %v2099 = vld [vmem:[%s2083 + $0x78] sm:$0xff]
        %v2100 = vld [vmem:[%s2083 + $0x80] sm:$0xff]
        %v2101 = vld [vmem:[%s2083 + $0x88] sm:$0xff]
        %v2102 = vrot.slane %v1889, 6
        %v2103 = vrot.slane %v1890, 6
        %v2105 = vsel %vm1933, %v2103, 0
        %2107 = vmatpush.msra.mxu0 %v2099
        %2108 = vmatpush.msra.mxu0 %v2098
        %2109 = vmatpush.msra.mxu0 %v2097
        %2110 = vmatpush.msra.mxu0 %v2096
        %2111 = vmatpush.msra.mxu0 %v2095
        %2112 = vmatpush.msra.mxu0 %v2094
        %2113 = vmatpush.msra.mxu0 %v2093
        %2114 = vmatpush.msra.mxu0 %v2092
        %2115 = vmatpush.msra.mxu0 %v2091
        %2116 = vmatpush.msra.mxu0 %v2090
        %2117 = vmatpush.msra.mxu0 %v2089
        %2118 = vmatpush.msra.mxu0 %v2088
        %2119 = vmatpush.msra.mxu0 %v2087
        %2120 = vmatpush.msra.mxu0 %v2086
        %2121 = vmatpush.msra.mxu0 %v2085
        %2122 = vmatpush.msra.mxu0 %v2084
        %2123 = vmatmul.f32.gmra.mxu0 %v2102
        %v2124 = vpop.f32.mrf.mxu0
        %v2125 = vadd.f32 0.0, %v2124
        %2126 = vdwg.mxu0
        %2127 = vmatpush.msra.mxu0 0.0
        %2128 = vmatpush.msra.mxu0 0.0
        %2129 = vmatpush.msra.mxu0 0.0
        %2130 = vmatpush.msra.mxu0 0.0
        %2131 = vmatpush.msra.mxu0 0.0
        %2132 = vmatpush.msra.mxu0 0.0
        %2133 = vmatpush.msra.mxu0 0.0
        %2134 = vmatpush.msra.mxu0 0.0
        %2135 = vmatpush.msra.mxu0 0.0
        %2136 = vmatpush.msra.mxu0 0.0
        %2137 = vmatpush.msra.mxu0 0.0
        %2138 = vmatpush.msra.mxu0 0.0
        %2139 = vmatpush.msra.mxu0 0.0
        %2140 = vmatpush.msra.mxu0 0.0
        %2141 = vmatpush.msra.mxu0 %v2101
        %2142 = vmatpush.msra.mxu0 %v2100
        %2143 = vmatmul.f32.gmra.mxu0 %v2105
        %v2144 = vpop.f32.mrf.mxu0
        %v2145 = vadd.f32 %v2125, %v2144
        %2146 = vdwg.mxu0
        %v2147 = vadd.f32 %v2082, %v2145
        %v2150 = vrot.slane %v1881, 1
        %v2151 = vrot.slane %v1882, 1
        %v2154 = vmax.f32 %v1881, %v2150
        %v2155 = vmax.f32 %v1882, %v2151
        %s2156 = scalar_lea.vmem %s5, 576
        %v2157 = vld [vmem:[%s2156] sm:$0xff]
        %v2158 = vld [vmem:[%s2156 + $0x8] sm:$0xff]
        %v2159 = vld [vmem:[%s2156 + $0x10] sm:$0xff]
        %v2160 = vld [vmem:[%s2156 + $0x18] sm:$0xff]
        %v2161 = vld [vmem:[%s2156 + $0x20] sm:$0xff]
        %v2162 = vld [vmem:[%s2156 + $0x28] sm:$0xff]
        %v2163 = vld [vmem:[%s2156 + $0x30] sm:$0xff]
        %v2164 = vld [vmem:[%s2156 + $0x38] sm:$0xff]
        %v2165 = vld [vmem:[%s2156 + $0x40] sm:$0xff]
        %v2166 = vld [vmem:[%s2156 + $0x48] sm:$0xff]
        %v2167 = vld [vmem:[%s2156 + $0x50] sm:$0xff]
        %v2168 = vld [vmem:[%s2156 + $0x58] sm:$0xff]
        %v2169 = vld [vmem:[%s2156 + $0x60] sm:$0xff]
        %v2170 = vld [vmem:[%s2156 + $0x68] sm:$0xff]
        %v2171 = vld [vmem:[%s2156 + $0x70] sm:$0xff]
        %v2172 = vld [vmem:[%s2156 + $0x78] sm:$0xff]
        %v2173 = vld [vmem:[%s2156 + $0x80] sm:$0xff]
        %v2174 = vld [vmem:[%s2156 + $0x88] sm:$0xff]
        %v2176 = vsel %vm1933, %v2155, 0
        %2178 = vmatpush.msra.mxu0 %v2172
        %2179 = vmatpush.msra.mxu0 %v2171
        %2180 = vmatpush.msra.mxu0 %v2170
        %2181 = vmatpush.msra.mxu0 %v2169
        %2182 = vmatpush.msra.mxu0 %v2168
        %2183 = vmatpush.msra.mxu0 %v2167
        %2184 = vmatpush.msra.mxu0 %v2166
        %2185 = vmatpush.msra.mxu0 %v2165
        %2186 = vmatpush.msra.mxu0 %v2164
        %2187 = vmatpush.msra.mxu0 %v2163
        %2188 = vmatpush.msra.mxu0 %v2162
        %2189 = vmatpush.msra.mxu0 %v2161
        %2190 = vmatpush.msra.mxu0 %v2160
        %2191 = vmatpush.msra.mxu0 %v2159
        %2192 = vmatpush.msra.mxu0 %v2158
        %2193 = vmatpush.msra.mxu0 %v2157
        %2194 = vmatmul.f32.gmra.mxu0 %v2154
        %v2195 = vpop.f32.mrf.mxu0
        %v2196 = vadd.f32 0.0, %v2195
        %2197 = vdwg.mxu0
        %2198 = vmatpush.msra.mxu0 0.0
        %2199 = vmatpush.msra.mxu0 0.0
        %2200 = vmatpush.msra.mxu0 0.0
        %2201 = vmatpush.msra.mxu0 0.0
        %2202 = vmatpush.msra.mxu0 0.0
        %2203 = vmatpush.msra.mxu0 0.0
        %2204 = vmatpush.msra.mxu0 0.0
        %2205 = vmatpush.msra.mxu0 0.0
        %2206 = vmatpush.msra.mxu0 0.0
        %2207 = vmatpush.msra.mxu0 0.0
        %2208 = vmatpush.msra.mxu0 0.0
        %2209 = vmatpush.msra.mxu0 0.0
        %2210 = vmatpush.msra.mxu0 0.0
        %2211 = vmatpush.msra.mxu0 0.0
        %2212 = vmatpush.msra.mxu0 %v2174
        %2213 = vmatpush.msra.mxu0 %v2173
        %2214 = vmatmul.f32.gmra.mxu0 %v2176
        %v2215 = vpop.f32.mrf.mxu0
        %v2216 = vadd.f32 %v2196, %v2215
        %2217 = vdwg.mxu0
        %v2218 = vadd.f32 %v2147, %v2216
        %v2219 = vld [vmem:[%s6] sm:$0x1]
        %v2220 = vadd.f32 %v2218, %v2219
        %v2221 = vmax.f32 %v2220, 0.0
        %v2222 = vld [vmem:[%s7] sm:$0xff]
        %v2223 = vld [vmem:[%s7 + $0x8] sm:$0xff]
        %v2224 = vld [vmem:[%s7 + $0x10] sm:$0xff]
        %v2225 = vld [vmem:[%s7 + $0x18] sm:$0xff]
        %v2226 = vld [vmem:[%s7 + $0x20] sm:$0xff]
        %v2227 = vld [vmem:[%s7 + $0x28] sm:$0xff]
        %v2228 = vld [vmem:[%s7 + $0x30] sm:$0xff]
        %v2229 = vld [vmem:[%s7 + $0x38] sm:$0xff]
        %v2230 = vld [vmem:[%s7 + $0x40] sm:$0xff]
        %v2231 = vld [vmem:[%s7 + $0x48] sm:$0xff]
        %v2232 = vld [vmem:[%s7 + $0x50] sm:$0xff]
        %v2233 = vld [vmem:[%s7 + $0x58] sm:$0xff]
        %v2234 = vld [vmem:[%s7 + $0x60] sm:$0xff]
        %v2235 = vld [vmem:[%s7 + $0x68] sm:$0xff]
        %v2236 = vld [vmem:[%s7 + $0x70] sm:$0xff]
        %v2237 = vld [vmem:[%s8] sm:$0x1]
        %vm2238 = vcmask 982016
        %v2240 = vsel %vm2238, %v2221, 0
        %2242 = vmatpush.msra.mxu0 0.0
        %2243 = vmatpush.msra.mxu0 %v2236
        %2244 = vmatpush.msra.mxu0 %v2235
        %2245 = vmatpush.msra.mxu0 %v2234
        %2246 = vmatpush.msra.mxu0 %v2233
        %2247 = vmatpush.msra.mxu0 %v2232
        %2248 = vmatpush.msra.mxu0 %v2231
        %2249 = vmatpush.msra.mxu0 %v2230
        %2250 = vmatpush.msra.mxu0 %v2229
        %2251 = vmatpush.msra.mxu0 %v2228
        %2252 = vmatpush.msra.mxu0 %v2227
        %2253 = vmatpush.msra.mxu0 %v2226
        %2254 = vmatpush.msra.mxu0 %v2225
        %2255 = vmatpush.msra.mxu0 %v2224
        %2256 = vmatpush.msra.mxu0 %v2223
        %2257 = vmatpush.msra.mxu0 %v2222
        %2258 = vmatmul.f32.gmra.mxu0 %v2240
        %v2259 = vpop.f32.mrf.mxu0
        %v2260 = vadd.f32 %v2237, %v2259
        %2261 = vdwg.mxu0
        %v2262 = vmax.f32 %v2260, 0.0
        %v2263 = vld [vmem:[%s9] sm:$0xff]
        %v2264 = vld [vmem:[%s9 + $0x8] sm:$0xff]
        %v2265 = vld [vmem:[%s9 + $0x10] sm:$0xff]
        %v2266 = vld [vmem:[%s9 + $0x18] sm:$0xff]
        %v2267 = vld [vmem:[%s9 + $0x20] sm:$0xff]
        %v2268 = vld [vmem:[%s9 + $0x28] sm:$0xff]
        %v2269 = vld [vmem:[%s9 + $0x30] sm:$0xff]
        %v2270 = vld [vmem:[%s9 + $0x38] sm:$0xff]
        %v2271 = vld [vmem:[%s9 + $0x40] sm:$0xff]
        %v2272 = vld [vmem:[%s9 + $0x48] sm:$0xff]
        %v2273 = vld [vmem:[%s9 + $0x50] sm:$0xf]
        %v2274 = vld [vmem:[%s10] sm:$0x1]
        %vm2275 = vcmask 687104
        %v2277 = vsel %vm2275, %v2262, 0
        %v2280 = vsel %vm741, %v2273, 0
        %2282 = vmatpush.msra.mxu0 0.0
        %2283 = vmatpush.msra.mxu0 0.0
        %2284 = vmatpush.msra.mxu0 0.0
        %2285 = vmatpush.msra.mxu0 0.0
        %2286 = vmatpush.msra.mxu0 0.0
        %2287 = vmatpush.msra.mxu0 %v2280
        %2288 = vmatpush.msra.mxu0 %v2272
        %2289 = vmatpush.msra.mxu0 %v2271
        %2290 = vmatpush.msra.mxu0 %v2270
        %2291 = vmatpush.msra.mxu0 %v2269
        %2292 = vmatpush.msra.mxu0 %v2268
        %2293 = vmatpush.msra.mxu0 %v2267
        %2294 = vmatpush.msra.mxu0 %v2266
        %2295 = vmatpush.msra.mxu0 %v2265
        %2296 = vmatpush.msra.mxu0 %v2264
        %2297 = vmatpush.msra.mxu0 %v2263
        %2298 = vmatmul.f32.gmra.mxu0 %v2277
        %v2299 = vpop.f32.mrf.mxu0
        %v2300 = vadd.f32 %v2274, %v2299
        %2301 = vdwg.mxu0
        %vm2302 = vcmask 73728
        %2303 = vst.msk [vmem:[%s378] sm:$0x1] %vm2302, %v2300
        %s2304 = sand.u32 %s269, 1
        %s2305 = scalar_lea.sflag [#allocation4], %s2304
        %s2306 = sand.u32 %s269, 1
        %s2307 = scalar_lea.vmem [#allocation3], %s2306
        // Predicated region
        $region65: #{net_forward.1} parent=63 // pred_check
          %p2308 = pneg %p279
        $region66: #{net_forward.1} parent=63 // pred_check_branch
          %2310 = sbr.rel (%p2308) target = $region68
        $region67: #{net_forward.1} parent=63 // pred_region
          %2312 = vsyncadd %s2305, 0
          %s2313 = scalar_lea.hbm %s11, %s25
          %s2315 = sshll.u32 %s2307, 4
          %s2316 = int_to_ptr.vmem [resolvable:$true] %s2315
          %s2317 = sshll.u32 %s2313, 4
          %s2318 = int_to_ptr.hbm [resolvable:$true] %s2317
          %2320 = dma.vmem_to_hbm [thread:$0]  %s2316, 16, %s2318, %s2305
        $region68: #{net_forward.1} parent=63 // pred_fallthru
          _
      $region64: #{net_forward.1} parent=5 // pred_fallthru
        _
      %p2321 = scmp.le.s32.totalorder 2, %s20
      // Predicated region
      $region69: #{net_forward.1} parent=5 // pred_check
        %p2322 = pneg %p2321
      $region70: #{net_forward.1} parent=5 // pred_check_branch
        %2324 = sbr.rel (%p2322) target = $region72
      $region71: #{net_forward.1} parent=5 // pred_region
        %s2325 = ssub.s32 %s20, 2
        // Predicated region
        $region73: #{net_forward.1} parent=71 // pred_check
          %p2326 = pneg %p285
        $region74: #{net_forward.1} parent=71 // pred_check_branch
          %2328 = sbr.rel (%p2326) target = $region76
        $region75: #{net_forward.1} parent=71 // pred_region
          %s2329 = sand.u32 %s270, 1
          %s2330 = scalar_lea.sflag [#allocation4], %s2329
          %s2331 = sand.u32 %s270, 1
          %s2332 = scalar_lea.vmem [#allocation3], %s2331
          %2334 = dma.done %s2330, 16
        $region76: #{net_forward.1} parent=71 // pred_fallthru
          _
      $region72: #{net_forward.1} parent=5 // pred_fallthru
        _
    $region6: #{net_forward.1} parent=1 // loop_footer
      %s24 = sadd.s32 1, %s20
    $region7: #{net_forward.1} parent=1 // loop_footer_branch
      %19 = sbr.rel target = $region3
    $region8: #{net_forward.1} parent=1 // loop_exit
      _
    %2335 = vsyncpa [#allocation4], 1
    %s2336 = scalar_lea.sflag [#allocation4], 1
    %2337 = vsyncpa %s2336, 1

</llo_original>
